<compile_context>
chip_gen: v7x
topology: tpu7x:2x2x1
jax: 0.10.0
libtpu: 0.0.40
codegen_flags: <defaults>
</compile_context>

<pallas_src>
import math

import jax
import jax.numpy as jnp
from jax import lax
from jax.experimental import pallas as pl
from jax.experimental.pallas import tpu as pltpu

# ----- small, forward-consistent config -----
BSZ = 2
SEQ = 8
D_MODEL = 32
N_HEADS = 4
D_FF = 64
HEAD_DIM = D_MODEL // N_HEADS
LN_EPS = 1e-5
ROWS = BSZ * SEQ
LANES = 128
NEG_INF = -1e30

# ----- row offsets inside the single packed weight buffer -----
_R_LN1G, _R_LN1B, _R_LN2G, _R_LN2B = 0, 16, 32, 48
_R_BQKV, _R_BO, _R_B1, _R_B2 = 64, 80, 96, 112
_R_WQKV = 128                      # (32, 96)
_R_WO = 160                        # (32, 32)
_R_W1 = 192                        # (32, 64)
_R_W2 = 224                        # (64, 32)
PACK_ROWS = _R_W2 + D_FF           # 288


def _layer_norm(x, gamma, beta, eps):
    mean = jnp.mean(x, axis=-1, keepdims=True)
    var = jnp.mean(jnp.square(x - mean), axis=-1, keepdims=True)  # biased, like torch LN
    return (x - mean) * lax.rsqrt(var + eps) * gamma + beta


_SQRT_2_OVER_PI = math.sqrt(2.0 / math.pi)


def _gelu_tanh(x):
    # tanh-form GELU: transcendental runs on the EUP (idle otherwise); deviation
    # from the exact erf form is negligible at these activation magnitudes.
    return 0.5 * x * (1.0 + jnp.tanh(_SQRT_2_OVER_PI * (x + 0.044715 * x * x * x)))


def gpt_layer_kernel(x_ref, bias_ref, w_ref, o_ref):
    x = x_ref[...]                      # (16, 32)
    bias = bias_ref[...]                # (16, 16) additive attention bias (flat token axis)

    # ---- static slices of the single packed weight buffer (one DMA for everything) ----
    ln1_g = w_ref[_R_LN1G:_R_LN1G + ROWS, 0:D_MODEL]      # pre-broadcast to 16 rows
    ln1_b = w_ref[_R_LN1B:_R_LN1B + ROWS, 0:D_MODEL]
    ln2_g = w_ref[_R_LN2G:_R_LN2G + ROWS, 0:D_MODEL]
    ln2_b = w_ref[_R_LN2B:_R_LN2B + ROWS, 0:D_MODEL]
    bqkv = w_ref[_R_BQKV:_R_BQKV + ROWS, 0:3 * D_MODEL]
    bo = w_ref[_R_BO:_R_BO + ROWS, 0:D_MODEL]
    b1 = w_ref[_R_B1:_R_B1 + ROWS, 0:D_FF]
    b2 = w_ref[_R_B2:_R_B2 + ROWS, 0:D_MODEL]
    wqkv = w_ref[_R_WQKV:_R_WQKV + D_MODEL, 0:3 * D_MODEL]   # (32, 96), Q cols pre-scaled
    w1 = w_ref[_R_W1:_R_W1 + D_MODEL, 0:D_FF]                # (32, 64)
    w2 = w_ref[_R_W2:_R_W2 + D_FF, 0:D_MODEL]                # (64, 32)

    # ---- sub-layer 1: LayerNorm -> masked MultiheadAttention -> residual ----
    y = _layer_norm(x, ln1_g, ln1_b, LN_EPS)
    qkv = jnp.dot(y, wqkv, preferred_element_type=jnp.float32) + bqkv     # (16, 96)

    # Per-head attention on the flat B*S token axis. `bias` already encodes
    # causal + key-padding + cross-batch masking, so every step is a plain 2-D
    # matmul (no batched einsums, no head concat, no (B,S,*) reshapes).
    attn_out = bo                                                          # (16, 32)
    for h in range(N_HEADS):
        q_h = qkv[:, h * HEAD_DIM:(h + 1) * HEAD_DIM]                      # (16, 8), pre-scaled
        k_h = qkv[:, D_MODEL + h * HEAD_DIM:D_MODEL + (h + 1) * HEAD_DIM]
        v_h = qkv[:, 2 * D_MODEL + h * HEAD_DIM:2 * D_MODEL + (h + 1) * HEAD_DIM]

        s = lax.dot_general(q_h, k_h, (((1,), (1,)), ((), ())),
                            preferred_element_type=jnp.float32) + bias     # (16, 16)
        s_max = jnp.max(s, axis=-1, keepdims=True)
        p = jnp.exp(s - s_max)
        denom = jnp.sum(p, axis=-1, keepdims=True)
        # EUP reciprocal (approx): ~1e-3-level relative deviation in attention
        # probabilities vs exact divide -- deliberate, within test tolerance.
        p = p * pl.reciprocal(denom, approx=True)
        # TODO(synk): attention dropout (dropout_mha) omitted -- eval-mode semantics.
        ctx_h = jnp.dot(p, v_h, preferred_element_type=jnp.float32)        # (16, 8)

        # concat(ctx_h) @ Wo  ==  sum_h ctx_h @ Wo[h*hd:(h+1)*hd, :]
        # (sublane slice of Wo -- cheap; avoids the XLU lane-concat of heads).
        wo_h = w_ref[_R_WO + h * HEAD_DIM:_R_WO + (h + 1) * HEAD_DIM, 0:D_MODEL]
        attn_out = attn_out + jnp.dot(ctx_h, wo_h, preferred_element_type=jnp.float32)

    # TODO(synk): residual dropout (dropout_res) omitted -- eval-mode semantics.
    h1 = x + attn_out

    # ---- sub-layer 2: LayerNorm -> FeedForward (GELU) -> residual ----
    y2 = _layer_norm(h1, ln2_g, ln2_b, LN_EPS)
    f = jnp.dot(y2, w1, preferred_element_type=jnp.float32) + b1
    f = _gelu_tanh(f)
    f = jnp.dot(f, w2, preferred_element_type=jnp.float32) + b2
    # TODO(synk): FF dropout (dropout_ff) + residual dropout omitted -- eval-mode.
    o_ref[...] = (h1 + f).astype(o_ref.dtype)


def pack_params(params):
    """Pack all GPTLayer weights/biases into one (PACK_ROWS, 128) f32 buffer.

    Done ONCE per weight set and reused across forward calls:
      * row-vectors are pre-broadcast to ROWS rows (no broadcast work in-kernel),
      * the Q columns of Wqkv / bqkv are pre-scaled by 1/sqrt(HEAD_DIM) so the
        kernel applies no score scaling,
      * everything is zero-padded to 128 lanes so a single contiguous DMA
        carries all parameters.
    """
    def pad_lanes(a):
        return jnp.pad(a.astype(jnp.float32), ((0, 0), (0, LANES - a.shape[1])))

    def bcast_rows(v):                       # (1, W) -> (ROWS, LANES)
        return pad_lanes(jnp.broadcast_to(v, (ROWS, v.shape[-1])))

    scale = 1.0 / math.sqrt(HEAD_DIM)
    qscale = jnp.concatenate([jnp.full((D_MODEL,), scale, jnp.float32),
                              jnp.ones((2 * D_MODEL,), jnp.float32)])
    wqkv_scaled = params['wqkv'] * qscale[None, :]
    bqkv_scaled = params['bqkv'] * qscale[None, :]

    blocks = [
        bcast_rows(params['ln1_g']),     # rows   0- 15
        bcast_rows(params['ln1_b']),     # rows  16- 31
        bcast_rows(params['ln2_g']),     # rows  32- 47
        bcast_rows(params['ln2_b']),     # rows  48- 63
        bcast_rows(bqkv_scaled),         # rows  64- 79
        bcast_rows(params['bo']),        # rows  80- 95
        bcast_rows(params['b1']),        # rows  96-111
        bcast_rows(params['b2']),        # rows 112-127
        pad_lanes(wqkv_scaled),          # rows 128-159
        pad_lanes(params['wo']),         # rows 160-191
        pad_lanes(params['w1']),         # rows 192-223
        pad_lanes(params['w2']),         # rows 224-287
    ]
    wbuf = jnp.concatenate(blocks, axis=0)
    assert wbuf.shape == (PACK_ROWS, LANES)
    return wbuf


def make_attention_bias(padding_mask, attn_mask):
    """(B*S, B*S) additive bias on the flattened token axis:
    NEG_INF where cross-batch OR causal-masked OR the key is a pad token."""
    B, S = padding_mask.shape
    rows_b = jnp.repeat(jnp.arange(B), S)
    rows_p = jnp.tile(jnp.arange(S), B)
    cross = rows_b[:, None] != rows_b[None, :]
    causal = attn_mask[rows_p[:, None], rows_p[None, :]]
    kpad = padding_mask.reshape(-1)[None, :]
    masked = cross | causal | kpad
    return jnp.where(masked, jnp.float32(NEG_INF), jnp.float32(0.0))


def gpt_layer(x, padding_mask, attn_mask, wbuf):
    """x: (B, S, D) f32, padding_mask: (B, S) bool (True = pad),
    attn_mask: (S, S) bool (True = masked / future), wbuf: packed weights."""
    B, S, D = x.shape
    x_flat = x.reshape(B * S, D)                       # free HBM reshape
    bias = make_attention_bias(padding_mask, attn_mask)  # tiny (B*S, B*S)

    vmem = pl.BlockSpec(memory_space=pltpu.MemorySpace.VMEM)

    # Single ungridded invocation, 3 inputs total (x, bias, packed weights);
    # everything is VMEM-resident (<< any chip's VMEM), nothing to pipeline.
    out_flat = pl.pallas_call(
        gpt_layer_kernel,
        out_shape=jax.ShapeDtypeStruct((B * S, D), jnp.float32),
        in_specs=[vmem, vmem, vmem],
        out_specs=vmem,
    )(x_flat, bias, wbuf)

    return out_flat.reshape(B, S, D)


def gpt_layer_ref(x, padding_mask, attn_mask, p):
    """Pure-JAX reference of the same forward pass (exact erf GELU, exact softmax)."""
    B, S, D = x.shape
    combined = attn_mask[None, :, :] | padding_mask[:, None, :]
    bias = jnp.where(combined, NEG_INF, 0.0).astype(jnp.float32)

    y = _layer_norm(x, p['ln1_g'][0], p['ln1_b'][0], LN_EPS)
    qkv = y @ p['wqkv'] + p['bqkv'][0]
    q, k, v = jnp.split(qkv, 3, axis=-1)

    def heads(t):
        return t.reshape(B, S, N_HEADS, HEAD_DIM).transpose(0, 2, 1, 3)

    q, k, v = heads(q), heads(k), heads(v)
    s = jnp.einsum('bhqd,bhkd->bhqk', q, k) / math.sqrt(HEAD_DIM)
    s = s + bias[:, None, :, :]
    pattn = jax.nn.softmax(s, axis=-1)
    ctx = jnp.einsum('bhqk,bhkd->bhqd', pattn, v)
    ctx = ctx.transpose(0, 2, 1, 3).reshape(B, S, D)
    attn_out = ctx @ p['wo'] + p['bo'][0]
    h = x + attn_out

    y2 = _layer_norm(h, p['ln2_g'][0], p['ln2_b'][0], LN_EPS)
    f = jax.nn.gelu(y2 @ p['w1'] + p['b1'][0], approximate=False)
    f = f @ p['w2'] + p['b2'][0]
    return h + f


def init_params(key):
    ks = jax.random.split(key, 8)
    s = 0.02
    return {
        'ln1_g': jnp.ones((1, D_MODEL), jnp.float32),
        'ln1_b': jnp.zeros((1, D_MODEL), jnp.float32),
        # nn.MultiheadAttention in_proj: (3D, D) in torch -> pre-transposed (D, 3D)
        'wqkv': s * jax.random.normal(ks[0], (D_MODEL, 3 * D_MODEL), jnp.float32),
        'bqkv': s * jax.random.normal(ks[1], (1, 3 * D_MODEL), jnp.float32),
        'wo': s * jax.random.normal(ks[2], (D_MODEL, D_MODEL), jnp.float32),
        'bo': s * jax.random.normal(ks[3], (1, D_MODEL), jnp.float32),
        'ln2_g': jnp.ones((1, D_MODEL), jnp.float32),
        'ln2_b': jnp.zeros((1, D_MODEL), jnp.float32),
        # ff: Linear(D, D_FF) then Linear(D_FF, D), pre-transposed to (in, out)
        'w1': s * jax.random.normal(ks[4], (D_MODEL, D_FF), jnp.float32),
        'b1': s * jax.random.normal(ks[5], (1, D_FF), jnp.float32),
        'w2': s * jax.random.normal(ks[6], (D_FF, D_MODEL), jnp.float32),
        'b2': s * jax.random.normal(ks[7], (1, D_MODEL), jnp.float32),
    }


if __name__ == "__main__":
    key = jax.random.PRNGKey(0)
    k_x, k_p = jax.random.split(key)

    x = jax.random.normal(k_x, (BSZ, SEQ, D_MODEL), jnp.float32)

    # padding mask: batch 0 has no padding, batch 1 has its last 2 tokens padded.
    padding_mask = jnp.zeros((BSZ, SEQ), dtype=bool)
    padding_mask = padding_mask.at[1, SEQ - 2:].set(True)
    # causal attention mask: True above the diagonal (future positions masked).
    attn_mask = jnp.triu(jnp.ones((SEQ, SEQ), dtype=bool), k=1)

    params = init_params(k_p)
    wbuf = jax.block_until_ready(pack_params(params))   # packed once, reused per call

    out = gpt_layer(x, padding_mask, attn_mask, wbuf)
    out = jax.block_until_ready(out)

    ref = gpt_layer_ref(x, padding_mask, attn_mask, params)
    assert out.shape == (BSZ, SEQ, D_MODEL)
    assert jnp.allclose(out, ref, rtol=2e-3, atol=2e-3), float(jnp.max(jnp.abs(out - ref)))

    print("KERNEL_OK")
</pallas_src>

<mosaic_0001>
module attributes {stable_mosaic.version = 11 : i64} {
  func.func @gpt_layer_kernel(%arg0: memref<16x32xf32, #tpu.memory_space<vmem>>, %arg1: memref<16x16xf32, #tpu.memory_space<vmem>>, %arg2: memref<288x128xf32, #tpu.memory_space<vmem>>, %arg3: memref<16x32xf32, #tpu.memory_space<vmem>>) attributes {dimension_semantics = [], scalar_prefetch = 0 : i64, scratch_operands = 0 : i64, tpu.core_type = #tpu.core_type<tc>} {
    %c0 = arith.constant 0 : index
    %c0_0 = arith.constant 0 : index
    %0 = vector.load %arg0[%c0, %c0_0] : memref<16x32xf32, #tpu.memory_space<vmem>>, vector<16x32xf32>
    %c0_1 = arith.constant 0 : index
    %c0_2 = arith.constant 0 : index
    %1 = vector.load %arg1[%c0_1, %c0_2] : memref<16x16xf32, #tpu.memory_space<vmem>>, vector<16x16xf32>
    %c0_3 = arith.constant 0 : index
    %c0_4 = arith.constant 0 : index
    %2 = vector.load %arg2[%c0_3, %c0_4] : memref<288x128xf32, #tpu.memory_space<vmem>>, vector<16x32xf32>
    %c16 = arith.constant 16 : index
    %c0_5 = arith.constant 0 : index
    %3 = vector.load %arg2[%c16, %c0_5] : memref<288x128xf32, #tpu.memory_space<vmem>>, vector<16x32xf32>
    %c32 = arith.constant 32 : index
    %c0_6 = arith.constant 0 : index
    %4 = vector.load %arg2[%c32, %c0_6] : memref<288x128xf32, #tpu.memory_space<vmem>>, vector<16x32xf32>
    %c48 = arith.constant 48 : index
    %c0_7 = arith.constant 0 : index
    %5 = vector.load %arg2[%c48, %c0_7] : memref<288x128xf32, #tpu.memory_space<vmem>>, vector<16x32xf32>
    %c64 = arith.constant 64 : index
    %c0_8 = arith.constant 0 : index
    %6 = vector.load %arg2[%c64, %c0_8] : memref<288x128xf32, #tpu.memory_space<vmem>>, vector<16x96xf32>
    %c80 = arith.constant 80 : index
    %c0_9 = arith.constant 0 : index
    %7 = vector.load %arg2[%c80, %c0_9] : memref<288x128xf32, #tpu.memory_space<vmem>>, vector<16x32xf32>
    %c96 = arith.constant 96 : index
    %c0_10 = arith.constant 0 : index
    %8 = vector.load %arg2[%c96, %c0_10] : memref<288x128xf32, #tpu.memory_space<vmem>>, vector<16x64xf32>
    %c112 = arith.constant 112 : index
    %c0_11 = arith.constant 0 : index
    %9 = vector.load %arg2[%c112, %c0_11] : memref<288x128xf32, #tpu.memory_space<vmem>>, vector<16x32xf32>
    %c128 = arith.constant 128 : index
    %c0_12 = arith.constant 0 : index
    %10 = vector.load %arg2[%c128, %c0_12] : memref<288x128xf32, #tpu.memory_space<vmem>>, vector<32x96xf32>
    %c192 = arith.constant 192 : index
    %c0_13 = arith.constant 0 : index
    %11 = vector.load %arg2[%c192, %c0_13] : memref<288x128xf32, #tpu.memory_space<vmem>>, vector<32x64xf32>
    %c224 = arith.constant 224 : index
    %c0_14 = arith.constant 0 : index
    %12 = vector.load %arg2[%c224, %c0_14] : memref<288x128xf32, #tpu.memory_space<vmem>>, vector<64x32xf32>
    %cst = arith.constant dense<0.000000e+00> : vector<16xf32>
    %13 = vector.multi_reduction <add>, %0, %cst [1] : vector<16x32xf32> to vector<16xf32>
    %14 = vector.shape_cast %13 : vector<16xf32> to vector<16x1xf32>
    %cst_15 = arith.constant 3.200000e+01 : f32
    %15 = vector.broadcast %cst_15 : f32 to vector<16x1xf32>
    %16 = arith.divf %14, %15 : vector<16x1xf32>
    %17 = vector.broadcast %16 : vector<16x1xf32> to vector<16x32xf32>
    %18 = arith.subf %0, %17 : vector<16x32xf32>
    %19 = arith.mulf %18, %18 : vector<16x32xf32>
    %cst_16 = arith.constant dense<0.000000e+00> : vector<16xf32>
    %20 = vector.multi_reduction <add>, %19, %cst_16 [1] : vector<16x32xf32> to vector<16xf32>
    %21 = vector.shape_cast %20 : vector<16xf32> to vector<16x1xf32>
    %cst_17 = arith.constant 3.200000e+01 : f32
    %22 = vector.broadcast %cst_17 : f32 to vector<16x1xf32>
    %23 = arith.divf %21, %22 : vector<16x1xf32>
    %24 = vector.broadcast %16 : vector<16x1xf32> to vector<16x32xf32>
    %25 = arith.subf %0, %24 : vector<16x32xf32>
    %cst_18 = arith.constant 9.99999974E-6 : f32
    %26 = vector.broadcast %cst_18 : f32 to vector<16x1xf32>
    %27 = arith.addf %23, %26 : vector<16x1xf32>
    %28 = math.rsqrt %27 : vector<16x1xf32>
    %29 = vector.broadcast %28 : vector<16x1xf32> to vector<16x32xf32>
    %30 = arith.mulf %25, %29 : vector<16x32xf32>
    %31 = arith.mulf %30, %2 : vector<16x32xf32>
    %32 = arith.addf %31, %3 : vector<16x32xf32>
    %cst_19 = arith.constant dense<0.000000e+00> : vector<16x96xf32>
    %33 = tpu.matmul %32, %10, %cst_19 {dimension_numbers = #tpu.dot_dimension_numbers<[1], [0], [0], [1], [0, 0, 1, 1], [], []>} : vector<16x32xf32>, vector<32x96xf32>, vector<16x96xf32> -> vector<16x96xf32>
    %34 = arith.addf %33, %6 : vector<16x96xf32>
    %35 = vector.extract_strided_slice %34 {offsets = [0, 0], sizes = [16, 8], strides = [1, 1]} : vector<16x96xf32> to vector<16x8xf32>
    %36 = vector.extract_strided_slice %34 {offsets = [0, 32], sizes = [16, 8], strides = [1, 1]} : vector<16x96xf32> to vector<16x8xf32>
    %37 = vector.extract_strided_slice %34 {offsets = [0, 64], sizes = [16, 8], strides = [1, 1]} : vector<16x96xf32> to vector<16x8xf32>
    %cst_20 = arith.constant dense<0.000000e+00> : vector<16x16xf32>
    %38 = tpu.matmul %35, %36, %cst_20 {dimension_numbers = #tpu.dot_dimension_numbers<[1], [1], [0], [0], [0, 0, 1, 0], [], []>} : vector<16x8xf32>, vector<16x8xf32>, vector<16x16xf32> -> vector<16x16xf32>
    %39 = arith.addf %38, %1 : vector<16x16xf32>
    %cst_21 = arith.constant dense<0xFF800000> : vector<16xf32>
    %40 = vector.multi_reduction <maximumf>, %39, %cst_21 [1] : vector<16x16xf32> to vector<16xf32>
    %41 = vector.shape_cast %40 : vector<16xf32> to vector<16x1xf32>
    %42 = vector.broadcast %41 : vector<16x1xf32> to vector<16x16xf32>
    %43 = arith.subf %39, %42 : vector<16x16xf32>
    %44 = math.exp %43 : vector<16x16xf32>
    %cst_22 = arith.constant dense<0.000000e+00> : vector<16xf32>
    %45 = vector.multi_reduction <add>, %44, %cst_22 [1] : vector<16x16xf32> to vector<16xf32>
    %46 = vector.shape_cast %45 : vector<16xf32> to vector<16x1xf32>
    %47 = tpu.reciprocal %46 {approx = true} : vector<16x1xf32> -> vector<16x1xf32>
    %48 = vector.broadcast %47 : vector<16x1xf32> to vector<16x16xf32>
    %49 = arith.mulf %44, %48 : vector<16x16xf32>
    %cst_23 = arith.constant dense<0.000000e+00> : vector<16x8xf32>
    %50 = tpu.matmul %49, %37, %cst_23 {dimension_numbers = #tpu.dot_dimension_numbers<[1], [0], [0], [1], [0, 0, 1, 1], [], []>} : vector<16x16xf32>, vector<16x8xf32>, vector<16x8xf32> -> vector<16x8xf32>
    %c160 = arith.constant 160 : index
    %c0_24 = arith.constant 0 : index
    %51 = vector.load %arg2[%c160, %c0_24] : memref<288x128xf32, #tpu.memory_space<vmem>>, vector<8x32xf32>
    %cst_25 = arith.constant dense<0.000000e+00> : vector<16x32xf32>
    %52 = tpu.matmul %50, %51, %cst_25 {dimension_numbers = #tpu.dot_dimension_numbers<[1], [0], [0], [1], [0, 0, 1, 1], [], []>} : vector<16x8xf32>, vector<8x32xf32>, vector<16x32xf32> -> vector<16x32xf32>
    %53 = arith.addf %7, %52 : vector<16x32xf32>
    %54 = vector.extract_strided_slice %34 {offsets = [0, 8], sizes = [16, 8], strides = [1, 1]} : vector<16x96xf32> to vector<16x8xf32>
    %55 = vector.extract_strided_slice %34 {offsets = [0, 40], sizes = [16, 8], strides = [1, 1]} : vector<16x96xf32> to vector<16x8xf32>
    %56 = vector.extract_strided_slice %34 {offsets = [0, 72], sizes = [16, 8], strides = [1, 1]} : vector<16x96xf32> to vector<16x8xf32>
    %cst_26 = arith.constant dense<0.000000e+00> : vector<16x16xf32>
    %57 = tpu.matmul %54, %55, %cst_26 {dimension_numbers = #tpu.dot_dimension_numbers<[1], [1], [0], [0], [0, 0, 1, 0], [], []>} : vector<16x8xf32>, vector<16x8xf32>, vector<16x16xf32> -> vector<16x16xf32>
    %58 = arith.addf %57, %1 : vector<16x16xf32>
    %cst_27 = arith.constant dense<0xFF800000> : vector<16xf32>
    %59 = vector.multi_reduction <maximumf>, %58, %cst_27 [1] : vector<16x16xf32> to vector<16xf32>
    %60 = vector.shape_cast %59 : vector<16xf32> to vector<16x1xf32>
    %61 = vector.broadcast %60 : vector<16x1xf32> to vector<16x16xf32>
    %62 = arith.subf %58, %61 : vector<16x16xf32>
    %63 = math.exp %62 : vector<16x16xf32>
    %cst_28 = arith.constant dense<0.000000e+00> : vector<16xf32>
    %64 = vector.multi_reduction <add>, %63, %cst_28 [1] : vector<16x16xf32> to vector<16xf32>
    %65 = vector.shape_cast %64 : vector<16xf32> to vector<16x1xf32>
    %66 = tpu.reciprocal %65 {approx = true} : vector<16x1xf32> -> vector<16x1xf32>
    %67 = vector.broadcast %66 : vector<16x1xf32> to vector<16x16xf32>
    %68 = arith.mulf %63, %67 : vector<16x16xf32>
    %cst_29 = arith.constant dense<0.000000e+00> : vector<16x8xf32>
    %69 = tpu.matmul %68, %56, %cst_29 {dimension_numbers = #tpu.dot_dimension_numbers<[1], [0], [0], [1], [0, 0, 1, 1], [], []>} : vector<16x16xf32>, vector<16x8xf32>, vector<16x8xf32> -> vector<16x8xf32>
    %c168 = arith.constant 168 : index
    %c0_30 = arith.constant 0 : index
    %70 = vector.load %arg2[%c168, %c0_30] : memref<288x128xf32, #tpu.memory_space<vmem>>, vector<8x32xf32>
    %cst_31 = arith.constant dense<0.000000e+00> : vector<16x32xf32>
    %71 = tpu.matmul %69, %70, %cst_31 {dimension_numbers = #tpu.dot_dimension_numbers<[1], [0], [0], [1], [0, 0, 1, 1], [], []>} : vector<16x8xf32>, vector<8x32xf32>, vector<16x32xf32> -> vector<16x32xf32>
    %72 = arith.addf %53, %71 : vector<16x32xf32>
    %73 = vector.extract_strided_slice %34 {offsets = [0, 16], sizes = [16, 8], strides = [1, 1]} : vector<16x96xf32> to vector<16x8xf32>
    %74 = vector.extract_strided_slice %34 {offsets = [0, 48], sizes = [16, 8], strides = [1, 1]} : vector<16x96xf32> to vector<16x8xf32>
    %75 = vector.extract_strided_slice %34 {offsets = [0, 80], sizes = [16, 8], strides = [1, 1]} : vector<16x96xf32> to vector<16x8xf32>
    %cst_32 = arith.constant dense<0.000000e+00> : vector<16x16xf32>
    %76 = tpu.matmul %73, %74, %cst_32 {dimension_numbers = #tpu.dot_dimension_numbers<[1], [1], [0], [0], [0, 0, 1, 0], [], []>} : vector<16x8xf32>, vector<16x8xf32>, vector<16x16xf32> -> vector<16x16xf32>
    %77 = arith.addf %76, %1 : vector<16x16xf32>
    %cst_33 = arith.constant dense<0xFF800000> : vector<16xf32>
    %78 = vector.multi_reduction <maximumf>, %77, %cst_33 [1] : vector<16x16xf32> to vector<16xf32>
    %79 = vector.shape_cast %78 : vector<16xf32> to vector<16x1xf32>
    %80 = vector.broadcast %79 : vector<16x1xf32> to vector<16x16xf32>
    %81 = arith.subf %77, %80 : vector<16x16xf32>
    %82 = math.exp %81 : vector<16x16xf32>
    %cst_34 = arith.constant dense<0.000000e+00> : vector<16xf32>
    %83 = vector.multi_reduction <add>, %82, %cst_34 [1] : vector<16x16xf32> to vector<16xf32>
    %84 = vector.shape_cast %83 : vector<16xf32> to vector<16x1xf32>
    %85 = tpu.reciprocal %84 {approx = true} : vector<16x1xf32> -> vector<16x1xf32>
    %86 = vector.broadcast %85 : vector<16x1xf32> to vector<16x16xf32>
    %87 = arith.mulf %82, %86 : vector<16x16xf32>
    %cst_35 = arith.constant dense<0.000000e+00> : vector<16x8xf32>
    %88 = tpu.matmul %87, %75, %cst_35 {dimension_numbers = #tpu.dot_dimension_numbers<[1], [0], [0], [1], [0, 0, 1, 1], [], []>} : vector<16x16xf32>, vector<16x8xf32>, vector<16x8xf32> -> vector<16x8xf32>
    %c176 = arith.constant 176 : index
    %c0_36 = arith.constant 0 : index
    %89 = vector.load %arg2[%c176, %c0_36] : memref<288x128xf32, #tpu.memory_space<vmem>>, vector<8x32xf32>
    %cst_37 = arith.constant dense<0.000000e+00> : vector<16x32xf32>
    %90 = tpu.matmul %88, %89, %cst_37 {dimension_numbers = #tpu.dot_dimension_numbers<[1], [0], [0], [1], [0, 0, 1, 1], [], []>} : vector<16x8xf32>, vector<8x32xf32>, vector<16x32xf32> -> vector<16x32xf32>
    %91 = arith.addf %72, %90 : vector<16x32xf32>
    %92 = vector.extract_strided_slice %34 {offsets = [0, 24], sizes = [16, 8], strides = [1, 1]} : vector<16x96xf32> to vector<16x8xf32>
    %93 = vector.extract_strided_slice %34 {offsets = [0, 56], sizes = [16, 8], strides = [1, 1]} : vector<16x96xf32> to vector<16x8xf32>
    %94 = vector.extract_strided_slice %34 {offsets = [0, 88], sizes = [16, 8], strides = [1, 1]} : vector<16x96xf32> to vector<16x8xf32>
    %cst_38 = arith.constant dense<0.000000e+00> : vector<16x16xf32>
    %95 = tpu.matmul %92, %93, %cst_38 {dimension_numbers = #tpu.dot_dimension_numbers<[1], [1], [0], [0], [0, 0, 1, 0], [], []>} : vector<16x8xf32>, vector<16x8xf32>, vector<16x16xf32> -> vector<16x16xf32>
    %96 = arith.addf %95, %1 : vector<16x16xf32>
    %cst_39 = arith.constant dense<0xFF800000> : vector<16xf32>
    %97 = vector.multi_reduction <maximumf>, %96, %cst_39 [1] : vector<16x16xf32> to vector<16xf32>
    %98 = vector.shape_cast %97 : vector<16xf32> to vector<16x1xf32>
    %99 = vector.broadcast %98 : vector<16x1xf32> to vector<16x16xf32>
    %100 = arith.subf %96, %99 : vector<16x16xf32>
    %101 = math.exp %100 : vector<16x16xf32>
    %cst_40 = arith.constant dense<0.000000e+00> : vector<16xf32>
    %102 = vector.multi_reduction <add>, %101, %cst_40 [1] : vector<16x16xf32> to vector<16xf32>
    %103 = vector.shape_cast %102 : vector<16xf32> to vector<16x1xf32>
    %104 = tpu.reciprocal %103 {approx = true} : vector<16x1xf32> -> vector<16x1xf32>
    %105 = vector.broadcast %104 : vector<16x1xf32> to vector<16x16xf32>
    %106 = arith.mulf %101, %105 : vector<16x16xf32>
    %cst_41 = arith.constant dense<0.000000e+00> : vector<16x8xf32>
    %107 = tpu.matmul %106, %94, %cst_41 {dimension_numbers = #tpu.dot_dimension_numbers<[1], [0], [0], [1], [0, 0, 1, 1], [], []>} : vector<16x16xf32>, vector<16x8xf32>, vector<16x8xf32> -> vector<16x8xf32>
    %c184 = arith.constant 184 : index
    %c0_42 = arith.constant 0 : index
    %108 = vector.load %arg2[%c184, %c0_42] : memref<288x128xf32, #tpu.memory_space<vmem>>, vector<8x32xf32>
    %cst_43 = arith.constant dense<0.000000e+00> : vector<16x32xf32>
    %109 = tpu.matmul %107, %108, %cst_43 {dimension_numbers = #tpu.dot_dimension_numbers<[1], [0], [0], [1], [0, 0, 1, 1], [], []>} : vector<16x8xf32>, vector<8x32xf32>, vector<16x32xf32> -> vector<16x32xf32>
    %110 = arith.addf %91, %109 : vector<16x32xf32>
    %111 = arith.addf %0, %110 : vector<16x32xf32>
    %cst_44 = arith.constant dense<0.000000e+00> : vector<16xf32>
    %112 = vector.multi_reduction <add>, %111, %cst_44 [1] : vector<16x32xf32> to vector<16xf32>
    %113 = vector.shape_cast %112 : vector<16xf32> to vector<16x1xf32>
    %cst_45 = arith.constant 3.200000e+01 : f32
    %114 = vector.broadcast %cst_45 : f32 to vector<16x1xf32>
    %115 = arith.divf %113, %114 : vector<16x1xf32>
    %116 = vector.broadcast %115 : vector<16x1xf32> to vector<16x32xf32>
    %117 = arith.subf %111, %116 : vector<16x32xf32>
    %118 = arith.mulf %117, %117 : vector<16x32xf32>
    %cst_46 = arith.constant dense<0.000000e+00> : vector<16xf32>
    %119 = vector.multi_reduction <add>, %118, %cst_46 [1] : vector<16x32xf32> to vector<16xf32>
    %120 = vector.shape_cast %119 : vector<16xf32> to vector<16x1xf32>
    %cst_47 = arith.constant 3.200000e+01 : f32
    %121 = vector.broadcast %cst_47 : f32 to vector<16x1xf32>
    %122 = arith.divf %120, %121 : vector<16x1xf32>
    %123 = vector.broadcast %115 : vector<16x1xf32> to vector<16x32xf32>
    %124 = arith.subf %111, %123 : vector<16x32xf32>
    %cst_48 = arith.constant 9.99999974E-6 : f32
    %125 = vector.broadcast %cst_48 : f32 to vector<16x1xf32>
    %126 = arith.addf %122, %125 : vector<16x1xf32>
    %127 = math.rsqrt %126 : vector<16x1xf32>
    %128 = vector.broadcast %127 : vector<16x1xf32> to vector<16x32xf32>
    %129 = arith.mulf %124, %128 : vector<16x32xf32>
    %130 = arith.mulf %129, %4 : vector<16x32xf32>
    %131 = arith.addf %130, %5 : vector<16x32xf32>
    %cst_49 = arith.constant dense<0.000000e+00> : vector<16x64xf32>
    %132 = tpu.matmul %131, %11, %cst_49 {dimension_numbers = #tpu.dot_dimension_numbers<[1], [0], [0], [1], [0, 0, 1, 1], [], []>} : vector<16x32xf32>, vector<32x64xf32>, vector<16x64xf32> -> vector<16x64xf32>
    %133 = arith.addf %132, %8 : vector<16x64xf32>
    %cst_50 = arith.constant 5.000000e-01 : f32
    %134 = vector.broadcast %cst_50 : f32 to vector<16x64xf32>
    %135 = arith.mulf %134, %133 : vector<16x64xf32>
    %cst_51 = arith.constant 4.471500e-02 : f32
    %136 = vector.broadcast %cst_51 : f32 to vector<16x64xf32>
    %137 = arith.mulf %136, %133 : vector<16x64xf32>
    %138 = arith.mulf %137, %133 : vector<16x64xf32>
    %139 = arith.mulf %138, %133 : vector<16x64xf32>
    %140 = arith.addf %133, %139 : vector<16x64xf32>
    %cst_52 = arith.constant 0.797884583 : f32
    %141 = vector.broadcast %cst_52 : f32 to vector<16x64xf32>
    %142 = arith.mulf %141, %140 : vector<16x64xf32>
    %143 = math.tanh %142 : vector<16x64xf32>
    %cst_53 = arith.constant 1.000000e+00 : f32
    %144 = vector.broadcast %cst_53 : f32 to vector<16x64xf32>
    %145 = arith.addf %144, %143 : vector<16x64xf32>
    %146 = arith.mulf %135, %145 : vector<16x64xf32>
    %cst_54 = arith.constant dense<0.000000e+00> : vector<16x32xf32>
    %147 = tpu.matmul %146, %12, %cst_54 {dimension_numbers = #tpu.dot_dimension_numbers<[1], [0], [0], [1], [0, 0, 1, 1], [], []>} : vector<16x64xf32>, vector<64x32xf32>, vector<16x32xf32> -> vector<16x32xf32>
    %148 = arith.addf %147, %9 : vector<16x32xf32>
    %149 = arith.addf %111, %148 : vector<16x32xf32>
    %c0_55 = arith.constant 0 : index
    %c0_56 = arith.constant 0 : index
    %150 = vector.load %arg3[%c0_55, %c0_56] : memref<16x32xf32, #tpu.memory_space<vmem>>, vector<16x32xf32>
    tpu.vector_store %arg3[%c0_55, %c0_56], %149 {strides = array<i32>} : memref<16x32xf32, #tpu.memory_space<vmem>>, vector<16x32xf32>,
    return
  }
}

</mosaic_0001>

<llo_original>
// kernel: tpu_custom_call.1
$region0: #{tpu_custom_call.1}
  #allocation0 [shape = 'u32[]', space=smem, size = 0x4, offset = 0x4, fixed_abs, tag = 'smem constant byte address 0x4 - core index']
  #allocation1 [shape = 'u32[144,128]{1,0:T(1,128)}', space=vmem, size = 0x12000, scoped, tag = 'internal scratch']
  %s0 = inlined_call_operand.hbm [shape: f32[16,32], index: 0, kind: input, shape index: {}]
  %s1 = inlined_call_operand.hbm [shape: f32[16,16], index: 1, kind: input, shape index: {}]
  %s2 = inlined_call_operand.hbm [shape: f32[288,128], index: 2, kind: input, shape index: {}]
  %s3 = inlined_call_operand.hbm [shape: f32[16,32], index: 3, kind: output, shape index: {}]
  %s4 = sld [smem:[#allocation0]]
  $region34: #{tpu_custom_call.1} parent=0
    _
  %s6 = ssub.s32 1, %s4
  %s7 = scalar_select 0, %s6, %s4
  $region1: #{tpu_custom_call.1} parent=0
    #allocation2 [shape = 'u8[8192]{0}', space=vmem, size = 0x2000, scoped, tag = 'input window, operand 0, single buffered']
    #allocation3 [shape = 's32[1]{0}', space=sflag, size = 0x4, scoped, tag = 'scoped memory for tpu_custom_call.1']
    #allocation4 [shape = 's32[1]{0}', space=sflag, size = 0x4, scoped, tag = 'scoped memory for tpu_custom_call.1']
    #allocation5 [shape = 'u8[8192]{0}', space=vmem, size = 0x2000, scoped, tag = 'input window, operand 1, single buffered']
    #allocation6 [shape = 's32[1]{0}', space=sflag, size = 0x4, scoped, tag = 'scoped memory for tpu_custom_call.1']
    #allocation7 [shape = 'u8[147456]{0}', space=vmem, size = 0x24000, scoped, tag = 'input window, operand 2, single buffered']
    #allocation8 [shape = 'u8[8192]{0}', space=vmem, size = 0x2000, scoped, tag = 'output window, operand 0, single buffered']
    %8 = vsyncpa [#allocation3], 0
    %9 = vsyncpa [#allocation6], 0
    %10 = vsyncpa [#allocation4], 0
    // Predicated region
    $region2: #{tpu_custom_call.1} parent=1 // pred_check
      _
    $region3: #{tpu_custom_call.1} parent=1 // pred_check_branch
      %12 = sbr.rel (0) target = $region5
    $region4: #{tpu_custom_call.1} parent=1 // pred_region
      %s14 = ssub.s32 256, 256
      %15 = vsyncadd [#allocation3], %s14
      %s16 = sshll.u32 [#allocation2], 4
      %s17 = int_to_ptr.vmem [resolvable:$true] %s16
      %22 = dma.hbm_to_vmem [thread:$0]  %s0, 256, %s17, [#allocation3], 128, 128, 8
    $region5: #{tpu_custom_call.1} parent=1 // pred_fallthru
      _
    // Predicated region
    $region6: #{tpu_custom_call.1} parent=1 // pred_check
      _
    $region7: #{tpu_custom_call.1} parent=1 // pred_check_branch
      %24 = sbr.rel (0) target = $region9
    $region8: #{tpu_custom_call.1} parent=1 // pred_region
      %s26 = ssub.s32 256, 256
      %27 = vsyncadd [#allocation6], %s26
      %s28 = sshll.u32 [#allocation5], 4
      %s29 = int_to_ptr.vmem [resolvable:$true] %s28
      %34 = dma.hbm_to_vmem [thread:$0]  %s1, 256, %s29, [#allocation6], 128, 128, 8
    $region9: #{tpu_custom_call.1} parent=1 // pred_fallthru
      _
    // Predicated region
    $region10: #{tpu_custom_call.1} parent=1 // pred_check
      _
    $region11: #{tpu_custom_call.1} parent=1 // pred_check_branch
      %36 = sbr.rel (0) target = $region13
    $region12: #{tpu_custom_call.1} parent=1 // pred_region
      %s38 = ssub.s32 4608, 4608
      %39 = vsyncadd [#allocation6], %s38
      %s40 = sshll.u32 [#allocation7], 4
      %s41 = int_to_ptr.vmem [resolvable:$true] %s40
      %46 = dma.hbm_to_vmem [thread:$0]  %s2, 4608, %s41, [#allocation6], 128, 128, 8
    $region13: #{tpu_custom_call.1} parent=1 // pred_fallthru
      _
    // Predicated region
    $region14: #{tpu_custom_call.1} parent=1 // pred_check
      _
    $region15: #{tpu_custom_call.1} parent=1 // pred_check_branch
      %48 = sbr.rel (0) target = $region17
    $region16: #{tpu_custom_call.1} parent=1 // pred_region
      %49 = dma.done [#allocation3], 256
    $region17: #{tpu_custom_call.1} parent=1 // pred_fallthru
      _
    // Predicated region
    $region18: #{tpu_custom_call.1} parent=1 // pred_check
      _
    $region19: #{tpu_custom_call.1} parent=1 // pred_check_branch
      %51 = sbr.rel (0) target = $region21
    $region20: #{tpu_custom_call.1} parent=1 // pred_region
      %52 = dma.done [#allocation6], 256
    $region21: #{tpu_custom_call.1} parent=1 // pred_fallthru
      _
    // Predicated region
    $region22: #{tpu_custom_call.1} parent=1 // pred_check
      _
    $region23: #{tpu_custom_call.1} parent=1 // pred_check_branch
      %54 = sbr.rel (0) target = $region25
    $region24: #{tpu_custom_call.1} parent=1 // pred_region
      %55 = dma.done [#allocation6], 4608
    $region25: #{tpu_custom_call.1} parent=1 // pred_fallthru
      _
    %v56 = vld [vmem:[#allocation2] sm:$0xff]
    %v57 = vld [vmem:[#allocation2 + $0x8] sm:$0xff]
    %v58 = vld [vmem:[#allocation5] sm:$0xff]
    %v59 = vld [vmem:[#allocation5 + $0x8] sm:$0xff]
    %v60 = vld [vmem:[#allocation7] sm:$0xff]
    %v61 = vld [vmem:[#allocation7 + $0x8] sm:$0xff]
    %v62 = vld [vmem:[#allocation7 + $0x10] sm:$0xff]
    %v63 = vld [vmem:[#allocation7 + $0x18] sm:$0xff]
    %v64 = vld [vmem:[#allocation7 + $0x20] sm:$0xff]
    %v65 = vld [vmem:[#allocation7 + $0x28] sm:$0xff]
    %v66 = vld [vmem:[#allocation7 + $0x30] sm:$0xff]
    %v67 = vld [vmem:[#allocation7 + $0x38] sm:$0xff]
    %v68 = vld [vmem:[#allocation7 + $0x40] sm:$0xff]
    %v69 = vld [vmem:[#allocation7 + $0x48] sm:$0xff]
    %v70 = vld [vmem:[#allocation7 + $0x50] sm:$0xff]
    %v71 = vld [vmem:[#allocation7 + $0x58] sm:$0xff]
    %v72 = vld [vmem:[#allocation7 + $0x60] sm:$0xff]
    %v73 = vld [vmem:[#allocation7 + $0x68] sm:$0xff]
    %v74 = vld [vmem:[#allocation7 + $0x70] sm:$0xff]
    %v75 = vld [vmem:[#allocation7 + $0x78] sm:$0xff]
    %v76 = vld [vmem:[#allocation7 + $0x80] sm:$0xff]
    %v77 = vld [vmem:[#allocation7 + $0x88] sm:$0xff]
    %v78 = vld [vmem:[#allocation7 + $0x90] sm:$0xff]
    %v79 = vld [vmem:[#allocation7 + $0x98] sm:$0xff]
    %v80 = vld [vmem:[#allocation7 + $0xc0] sm:$0xff]
    %v81 = vld [vmem:[#allocation7 + $0xc8] sm:$0xff]
    %v82 = vld [vmem:[#allocation7 + $0xd0] sm:$0xff]
    %v83 = vld [vmem:[#allocation7 + $0xd8] sm:$0xff]
    %v84 = vld [vmem:[#allocation7 + $0xe0] sm:$0xff]
    %v85 = vld [vmem:[#allocation7 + $0xe8] sm:$0xff]
    %v86 = vld [vmem:[#allocation7 + $0xf0] sm:$0xff]
    %v87 = vld [vmem:[#allocation7 + $0xf8] sm:$0xff]
    %v88 = vld [vmem:[#allocation7 + $0x100] sm:$0xff]
    %v89 = vld [vmem:[#allocation7 + $0x108] sm:$0xff]
    %v90 = vld [vmem:[#allocation7 + $0x110] sm:$0xff]
    %v91 = vld [vmem:[#allocation7 + $0x118] sm:$0xff]
    %vm92 = vcmask 261120
    %v93 = vsel %vm92, %v56, 0.0
    %94 = vadd.xlane.f32.xlu0 %v93
    %v95 = vpop.xlane.xlu0 %94
    %v96 = vsel %vm92, %v57, 0.0
    %97 = vadd.xlane.f32.xlu0 %v96
    %v98 = vpop.xlane.xlu0 %97
    %v99 = vrcp.pop 32.0
    %v100 = vmul.f32 %v95, %v99
    %v101 = vmul.f32 %v98, %v99
    %v102 = vsub.f32 %v56, %v100
    %v103 = vsub.f32 %v57, %v101
    %v104 = vmul.f32 %v102, %v102
    %v105 = vmul.f32 %v103, %v103
    %v106 = vsel %vm92, %v104, 0.0
    %107 = vadd.xlane.f32.xlu0 %v106
    %v108 = vpop.xlane.xlu0 %107
    %v109 = vsel %vm92, %v105, 0.0
    %110 = vadd.xlane.f32.xlu0 %v109
    %v111 = vpop.xlane.xlu0 %110
    %v112 = vmul.f32 %v108, %v99
    %v113 = vmul.f32 %v111, %v99
    %v114 = vadd.f32 %v112, 1e-05
    %v115 = vadd.f32 %v113, 1e-05
    %v116 = vrsqrt.pop %v114
    %v117 = vrsqrt.pop %v115
    %v118 = vmul.f32 %v102, %v116
    %v119 = vmul.f32 %v103, %v117
    %v120 = vmul.f32 %v118, %v60
    %v121 = vmul.f32 %v119, %v61
    %v122 = vadd.f32 %v120, %v62
    %v123 = vadd.f32 %v121, %v63
    %v125 = vsel %vm92, %v122, 0
    %v128 = vsel %vm92, %v123, 0
    %130 = vmatprep.subr.mxu0 0.0
    %131 = vmatpush1.msra.mxu0 %v76
    %132 = vmatprep.subr.mxu0 0.0
    %133 = vmatpush1.msra.mxu0 %v77
    %134 = vmatprep.subr.mxu0 0.0
    %135 = vmatpush1.msra.mxu0 %v78
    %136 = vmatprep.subr.mxu0 0.0
    %137 = vmatpush1.msra.mxu0 %v79
    %138 = vmatprep.subr.mxu0 0.0
    %139 = vmatpush1.msra.mxu0 0.0
    %140 = vmatprep.subr.mxu0 0.0
    %141 = vmatpush1.msra.mxu0 0.0
    %142 = vmatprep.subr.mxu0 0.0
    %143 = vmatpush1.msra.mxu0 0.0
    %144 = vmatprep.subr.mxu0 0.0
    %145 = vmatpush1.msra.mxu0 0.0
    %146 = vmatprep.subr.mxu0 0.0
    %147 = vmatpush1.msra.mxu0 0.0
    %148 = vmatprep.subr.mxu0 0.0
    %149 = vmatpush1.msra.mxu0 0.0
    %150 = vmatprep.subr.mxu0 0.0
    %151 = vmatpush1.msra.mxu0 0.0
    %152 = vmatprep.subr.mxu0 0.0
    %153 = vmatpush1.msra.mxu0 0.0
    %154 = vmatprep.subr.mxu0 0.0
    %155 = vmatpush1.msra.mxu0 0.0
    %156 = vmatprep.subr.mxu0 0.0
    %157 = vmatpush1.msra.mxu0 0.0
    %158 = vmatprep.subr.mxu0 0.0
    %159 = vmatpush1.msra.mxu0 0.0
    %160 = vmatprep.subr.mxu0 0.0
    %161 = vmatpush1.msra.mxu0 0.0
    %162 = vmatprep.subr.mxu0 0.0
    %163 = vmatpush1.msra.mxu0 0.0
    %164 = vmatprep.subr.mxu0 0.0
    %165 = vmatpush1.msra.mxu0 0.0
    %166 = vmatprep.subr.mxu0 0.0
    %167 = vmatpush1.msra.mxu0 0.0
    %168 = vmatprep.subr.mxu0 0.0
    %169 = vmatpush1.msra.mxu0 0.0
    %170 = vmatprep.subr.mxu0 0.0
    %171 = vmatpush1.msra.mxu0 0.0
    %172 = vmatprep.subr.mxu0 0.0
    %173 = vmatpush1.msra.mxu0 0.0
    %174 = vmatprep.subr.mxu0 0.0
    %175 = vmatpush1.msra.mxu0 0.0
    %176 = vmatprep.subr.mxu0 0.0
    %177 = vmatpush1.msra.mxu0 0.0
    %178 = vmatprep.subr.mxu0 0.0
    %179 = vmatpush1.msra.mxu0 0.0
    %180 = vmatprep.subr.mxu0 0.0
    %181 = vmatpush1.msra.mxu0 0.0
    %182 = vmatprep.subr.mxu0 0.0
    %183 = vmatpush1.msra.mxu0 0.0
    %184 = vmatprep.subr.mxu0 0.0
    %185 = vmatpush1.msra.mxu0 0.0
    %186 = vmatprep.subr.mxu0 0.0
    %187 = vmatpush1.msra.mxu0 0.0
    %188 = vmatprep.subr.mxu0 0.0
    %189 = vmatpush1.msra.mxu0 0.0
    %190 = vmatprep.subr.mxu0 0.0
    %191 = vmatpush1.msra.mxu0 0.0
    %192 = vmatprep.subr.mxu0 0.0
    %193 = vmatpush1.msra.mxu0 0.0
    %194 = vmatprep.mubr.f32.mxu0 0.0
    %195 = vmatmul.mubr.f32.gmra.mrb[0].mxu0 %v125
    %v196 = vpop.f32.mrb[0].mxu0
    %v197 = vadd.f32 %v68, %v196
    %v198 = vpop.f32.mrb[0].mxu0
    %199 = vmatprep.mubr.f32.mxu0 0.0
    %200 = vmatmul.mubr.f32.gmra.mrb[0].mxu0 %v128
    %v201 = vpop.f32.mrb[0].mxu0
    %v202 = vadd.f32 %v69, %v201
    %v203 = vpop.f32.mrb[0].mxu0
    %204 = vdwg.mxu0
    %207 = vrot.lane.b32.xlu0 %v197, 96
    %v208 = vpop.permute.xlu0 %207
    %209 = vrot.lane.b32.xlu0 %v202, 96
    %v210 = vpop.permute.xlu0 %209
    %vm211 = vcmask 64512
    %v212 = vsel %vm211, %v197, 0
    %v214 = vsel %vm211, %v202, 0
    %v216 = vsel %vm211, %v208, 0
    %v218 = vsel %vm211, %v210, 0
    %220 = vmatprep.subr.mxu0 0.0
    %221 = vmatpush1.xpose.msra.mxu0 %v216
    %222 = vmatprep.subr.mxu0 0.0
    %223 = vmatpush1.xpose.msra.mxu0 %v218
    %224 = vmatprep.subr.mxu0 0.0
    %225 = vmatpush1.xpose.msra.mxu0 0.0
    %226 = vmatprep.subr.mxu0 0.0
    %227 = vmatpush1.xpose.msra.mxu0 0.0
    %228 = vmatprep.subr.mxu0 0.0
    %229 = vmatpush1.xpose.msra.mxu0 0.0
    %230 = vmatprep.subr.mxu0 0.0
    %231 = vmatpush1.xpose.msra.mxu0 0.0
    %232 = vmatprep.subr.mxu0 0.0
    %233 = vmatpush1.xpose.msra.mxu0 0.0
    %234 = vmatprep.subr.mxu0 0.0
    %235 = vmatpush1.xpose.msra.mxu0 0.0
    %236 = vmatprep.subr.mxu0 0.0
    %237 = vmatpush1.xpose.msra.mxu0 0.0
    %238 = vmatprep.subr.mxu0 0.0
    %239 = vmatpush1.xpose.msra.mxu0 0.0
    %240 = vmatprep.subr.mxu0 0.0
    %241 = vmatpush1.xpose.msra.mxu0 0.0
    %242 = vmatprep.subr.mxu0 0.0
    %243 = vmatpush1.xpose.msra.mxu0 0.0
    %244 = vmatprep.subr.mxu0 0.0
    %245 = vmatpush1.xpose.msra.mxu0 0.0
    %246 = vmatprep.subr.mxu0 0.0
    %247 = vmatpush1.xpose.msra.mxu0 0.0
    %248 = vmatprep.subr.mxu0 0.0
    %249 = vmatpush1.xpose.msra.mxu0 0.0
    %250 = vmatprep.subr.mxu0 0.0
    %251 = vmatpush1.xpose.msra.mxu0 0.0
    %252 = vmatprep.subr.mxu0 0.0
    %253 = vmatpush1.xpose.msra.mxu0 0.0
    %254 = vmatprep.subr.mxu0 0.0
    %255 = vmatpush1.xpose.msra.mxu0 0.0
    %256 = vmatprep.subr.mxu0 0.0
    %257 = vmatpush1.xpose.msra.mxu0 0.0
    %258 = vmatprep.subr.mxu0 0.0
    %259 = vmatpush1.xpose.msra.mxu0 0.0
    %260 = vmatprep.subr.mxu0 0.0
    %261 = vmatpush1.xpose.msra.mxu0 0.0
    %262 = vmatprep.subr.mxu0 0.0
    %263 = vmatpush1.xpose.msra.mxu0 0.0
    %264 = vmatprep.subr.mxu0 0.0
    %265 = vmatpush1.xpose.msra.mxu0 0.0
    %266 = vmatprep.subr.mxu0 0.0
    %267 = vmatpush1.xpose.msra.mxu0 0.0
    %268 = vmatprep.subr.mxu0 0.0
    %269 = vmatpush1.xpose.msra.mxu0 0.0
    %270 = vmatprep.subr.mxu0 0.0
    %271 = vmatpush1.xpose.msra.mxu0 0.0
    %272 = vmatprep.subr.mxu0 0.0
    %273 = vmatpush1.xpose.msra.mxu0 0.0
    %274 = vmatprep.subr.mxu0 0.0
    %275 = vmatpush1.xpose.msra.mxu0 0.0
    %276 = vmatprep.subr.mxu0 0.0
    %277 = vmatpush1.xpose.msra.mxu0 0.0
    %278 = vmatprep.subr.mxu0 0.0
    %279 = vmatpush1.xpose.msra.mxu0 0.0
    %280 = vmatprep.subr.mxu0 0.0
    %281 = vmatpush1.xpose.msra.mxu0 0.0
    %282 = vmatprep.subr.mxu0 0.0
    %283 = vmatpush1.xpose.msra.mxu0 0.0
    %284 = vmatprep.mubr.f32.mxu0 0.0
    %285 = vmatmul.mubr.f32.gmra.mrb[0].mxu0 %v212
    %v286 = vpop.f32.mrb[0].mxu0
    %v287 = vadd.f32 %v58, %v286
    %v288 = vpop.f32.mrb[0].mxu0
    %289 = vmatprep.mubr.f32.mxu0 0.0
    %290 = vmatmul.mubr.f32.gmra.mrb[0].mxu0 %v214
    %v291 = vpop.f32.mrb[0].mxu0
    %v292 = vadd.f32 %v59, %v291
    %v293 = vpop.f32.mrb[0].mxu0
    %294 = vdwg.mxu0
    %vm295 = vcmask 130048
    %v296 = vsel %vm295, %v287, -inf
    %297 = vmax.xlane.f32.xlu0 %v296
    %v298 = vpop.xlane.xlu0 %297
    %v299 = vsel %vm295, %v292, -inf
    %300 = vmax.xlane.f32.xlu0 %v299
    %v301 = vpop.xlane.xlu0 %300
    %v302 = vsub.f32 %v287, %v298
    %v303 = vsub.f32 %v292, %v301
    %v304 = vmul.f32 %v302, 1.442695
    %v305 = vpow.pop %v304
    %v306 = vmul.f32 %v303, 1.442695
    %v307 = vpow.pop %v306
    %v308 = vsel %vm295, %v305, 0.0
    %309 = vadd.xlane.f32.xlu0 %v308
    %v310 = vpop.xlane.xlu0 %309
    %v311 = vsel %vm295, %v307, 0.0
    %312 = vadd.xlane.f32.xlu0 %v311
    %v313 = vpop.xlane.xlu0 %312
    %v314 = vrcp.pop %v310
    %v315 = vrcp.pop %v313
    %v316 = vmul.f32 %v305, %v314
    %v317 = vmul.f32 %v307, %v315
    %318 = vrot.lane.b32.xlu0 %v197, 64
    %v319 = vpop.permute.xlu0 %318
    %320 = vrot.lane.b32.xlu0 %v202, 64
    %v321 = vpop.permute.xlu0 %320
    %v325 = vsel %vm295, %v316, 0
    %v328 = vsel %vm295, %v317, 0
    %330 = vmatprep.subr.mxu0 0.0
    %331 = vmatpush1.msra.mxu0 %v319
    %332 = vmatprep.subr.mxu0 0.0
    %333 = vmatpush1.msra.mxu0 %v321
    %334 = vmatprep.subr.mxu0 0.0
    %335 = vmatpush1.msra.mxu0 0.0
    %336 = vmatprep.subr.mxu0 0.0
    %337 = vmatpush1.msra.mxu0 0.0
    %338 = vmatprep.subr.mxu0 0.0
    %339 = vmatpush1.msra.mxu0 0.0
    %340 = vmatprep.subr.mxu0 0.0
    %341 = vmatpush1.msra.mxu0 0.0
    %342 = vmatprep.subr.mxu0 0.0
    %343 = vmatpush1.msra.mxu0 0.0
    %344 = vmatprep.subr.mxu0 0.0
    %345 = vmatpush1.msra.mxu0 0.0
    %346 = vmatprep.subr.mxu0 0.0
    %347 = vmatpush1.msra.mxu0 0.0
    %348 = vmatprep.subr.mxu0 0.0
    %349 = vmatpush1.msra.mxu0 0.0
    %350 = vmatprep.subr.mxu0 0.0
    %351 = vmatpush1.msra.mxu0 0.0
    %352 = vmatprep.subr.mxu0 0.0
    %353 = vmatpush1.msra.mxu0 0.0
    %354 = vmatprep.subr.mxu0 0.0
    %355 = vmatpush1.msra.mxu0 0.0
    %356 = vmatprep.subr.mxu0 0.0
    %357 = vmatpush1.msra.mxu0 0.0
    %358 = vmatprep.subr.mxu0 0.0
    %359 = vmatpush1.msra.mxu0 0.0
    %360 = vmatprep.subr.mxu0 0.0
    %361 = vmatpush1.msra.mxu0 0.0
    %362 = vmatprep.subr.mxu0 0.0
    %363 = vmatpush1.msra.mxu0 0.0
    %364 = vmatprep.subr.mxu0 0.0
    %365 = vmatpush1.msra.mxu0 0.0
    %366 = vmatprep.subr.mxu0 0.0
    %367 = vmatpush1.msra.mxu0 0.0
    %368 = vmatprep.subr.mxu0 0.0
    %369 = vmatpush1.msra.mxu0 0.0
    %370 = vmatprep.subr.mxu0 0.0
    %371 = vmatpush1.msra.mxu0 0.0
    %372 = vmatprep.subr.mxu0 0.0
    %373 = vmatpush1.msra.mxu0 0.0
    %374 = vmatprep.subr.mxu0 0.0
    %375 = vmatpush1.msra.mxu0 0.0
    %376 = vmatprep.subr.mxu0 0.0
    %377 = vmatpush1.msra.mxu0 0.0
    %378 = vmatprep.subr.mxu0 0.0
    %379 = vmatpush1.msra.mxu0 0.0
    %380 = vmatprep.subr.mxu0 0.0
    %381 = vmatpush1.msra.mxu0 0.0
    %382 = vmatprep.subr.mxu0 0.0
    %383 = vmatpush1.msra.mxu0 0.0
    %384 = vmatprep.subr.mxu0 0.0
    %385 = vmatpush1.msra.mxu0 0.0
    %386 = vmatprep.subr.mxu0 0.0
    %387 = vmatpush1.msra.mxu0 0.0
    %388 = vmatprep.subr.mxu0 0.0
    %389 = vmatpush1.msra.mxu0 0.0
    %390 = vmatprep.subr.mxu0 0.0
    %391 = vmatpush1.msra.mxu0 0.0
    %392 = vmatprep.subr.mxu0 0.0
    %393 = vmatpush1.msra.mxu0 0.0
    %394 = vmatprep.mubr.f32.mxu0 0.0
    %395 = vmatmul.mubr.f32.gmra.mrb[0].mxu0 %v325
    %v396 = vpop.f32.mrb[0].mxu0
    %v397 = vadd.f32 0.0, %v396
    %v398 = vpop.f32.mrb[0].mxu0
    %399 = vmatprep.mubr.f32.mxu0 0.0
    %400 = vmatmul.mubr.f32.gmra.mrb[0].mxu0 %v328
    %v401 = vpop.f32.mrb[0].mxu0
    %v402 = vadd.f32 0.0, %v401
    %v403 = vpop.f32.mrb[0].mxu0
    %404 = vdwg.mxu0
    %v405 = vld [vmem:[#allocation7 + $0xa0] sm:$0xff]
    %v407 = vsel %vm211, %v397, 0
    %v410 = vsel %vm211, %v402, 0
    %412 = vmatprep.subr.mxu0 0.0
    %413 = vmatpush1.msra.mxu0 %v405
    %414 = vmatprep.subr.mxu0 0.0
    %415 = vmatpush1.msra.mxu0 0.0
    %416 = vmatprep.subr.mxu0 0.0
    %417 = vmatpush1.msra.mxu0 0.0
    %418 = vmatprep.subr.mxu0 0.0
    %419 = vmatpush1.msra.mxu0 0.0
    %420 = vmatprep.subr.mxu0 0.0
    %421 = vmatpush1.msra.mxu0 0.0
    %422 = vmatprep.subr.mxu0 0.0
    %423 = vmatpush1.msra.mxu0 0.0
    %424 = vmatprep.subr.mxu0 0.0
    %425 = vmatpush1.msra.mxu0 0.0
    %426 = vmatprep.subr.mxu0 0.0
    %427 = vmatpush1.msra.mxu0 0.0
    %428 = vmatprep.subr.mxu0 0.0
    %429 = vmatpush1.msra.mxu0 0.0
    %430 = vmatprep.subr.mxu0 0.0
    %431 = vmatpush1.msra.mxu0 0.0
    %432 = vmatprep.subr.mxu0 0.0
    %433 = vmatpush1.msra.mxu0 0.0
    %434 = vmatprep.subr.mxu0 0.0
    %435 = vmatpush1.msra.mxu0 0.0
    %436 = vmatprep.subr.mxu0 0.0
    %437 = vmatpush1.msra.mxu0 0.0
    %438 = vmatprep.subr.mxu0 0.0
    %439 = vmatpush1.msra.mxu0 0.0
    %440 = vmatprep.subr.mxu0 0.0
    %441 = vmatpush1.msra.mxu0 0.0
    %442 = vmatprep.subr.mxu0 0.0
    %443 = vmatpush1.msra.mxu0 0.0
    %444 = vmatprep.subr.mxu0 0.0
    %445 = vmatpush1.msra.mxu0 0.0
    %446 = vmatprep.subr.mxu0 0.0
    %447 = vmatpush1.msra.mxu0 0.0
    %448 = vmatprep.subr.mxu0 0.0
    %449 = vmatpush1.msra.mxu0 0.0
    %450 = vmatprep.subr.mxu0 0.0
    %451 = vmatpush1.msra.mxu0 0.0
    %452 = vmatprep.subr.mxu0 0.0
    %453 = vmatpush1.msra.mxu0 0.0
    %454 = vmatprep.subr.mxu0 0.0
    %455 = vmatpush1.msra.mxu0 0.0
    %456 = vmatprep.subr.mxu0 0.0
    %457 = vmatpush1.msra.mxu0 0.0
    %458 = vmatprep.subr.mxu0 0.0
    %459 = vmatpush1.msra.mxu0 0.0
    %460 = vmatprep.subr.mxu0 0.0
    %461 = vmatpush1.msra.mxu0 0.0
    %462 = vmatprep.subr.mxu0 0.0
    %463 = vmatpush1.msra.mxu0 0.0
    %464 = vmatprep.subr.mxu0 0.0
    %465 = vmatpush1.msra.mxu0 0.0
    %466 = vmatprep.subr.mxu0 0.0
    %467 = vmatpush1.msra.mxu0 0.0
    %468 = vmatprep.subr.mxu0 0.0
    %469 = vmatpush1.msra.mxu0 0.0
    %470 = vmatprep.subr.mxu0 0.0
    %471 = vmatpush1.msra.mxu0 0.0
    %472 = vmatprep.subr.mxu0 0.0
    %473 = vmatpush1.msra.mxu0 0.0
    %474 = vmatprep.subr.mxu0 0.0
    %475 = vmatpush1.msra.mxu0 0.0
    %476 = vmatprep.mubr.f32.mxu0 0.0
    %477 = vmatmul.mubr.f32.gmra.mrb[0].mxu0 %v407
    %v478 = vpop.f32.mrb[0].mxu0
    %v479 = vadd.f32 0.0, %v478
    %v480 = vpop.f32.mrb[0].mxu0
    %481 = vmatprep.mubr.f32.mxu0 0.0
    %482 = vmatmul.mubr.f32.gmra.mrb[0].mxu0 %v410
    %v483 = vpop.f32.mrb[0].mxu0
    %v484 = vadd.f32 0.0, %v483
    %v485 = vpop.f32.mrb[0].mxu0
    %486 = vdwg.mxu0
    %v487 = vadd.f32 %v70, %v479
    %v488 = vadd.f32 %v71, %v484
    %489 = vrot.lane.b32.xlu0 %v197, 120
    %v490 = vpop.permute.xlu0 %489
    %491 = vrot.lane.b32.xlu0 %v202, 120
    %v492 = vpop.permute.xlu0 %491
    %493 = vrot.lane.b32.xlu0 %v197, 88
    %v494 = vpop.permute.xlu0 %493
    %495 = vrot.lane.b32.xlu0 %v202, 88
    %v496 = vpop.permute.xlu0 %495
    %v497 = vsel %vm211, %v490, 0
    %v499 = vsel %vm211, %v492, 0
    %v501 = vsel %vm211, %v494, 0
    %v503 = vsel %vm211, %v496, 0
    %505 = vmatprep.subr.mxu0 0.0
    %506 = vmatpush1.xpose.msra.mxu0 %v501
    %507 = vmatprep.subr.mxu0 0.0
    %508 = vmatpush1.xpose.msra.mxu0 %v503
    %509 = vmatprep.subr.mxu0 0.0
    %510 = vmatpush1.xpose.msra.mxu0 0.0
    %511 = vmatprep.subr.mxu0 0.0
    %512 = vmatpush1.xpose.msra.mxu0 0.0
    %513 = vmatprep.subr.mxu0 0.0
    %514 = vmatpush1.xpose.msra.mxu0 0.0
    %515 = vmatprep.subr.mxu0 0.0
    %516 = vmatpush1.xpose.msra.mxu0 0.0
    %517 = vmatprep.subr.mxu0 0.0
    %518 = vmatpush1.xpose.msra.mxu0 0.0
    %519 = vmatprep.subr.mxu0 0.0
    %520 = vmatpush1.xpose.msra.mxu0 0.0
    %521 = vmatprep.subr.mxu0 0.0
    %522 = vmatpush1.xpose.msra.mxu0 0.0
    %523 = vmatprep.subr.mxu0 0.0
    %524 = vmatpush1.xpose.msra.mxu0 0.0
    %525 = vmatprep.subr.mxu0 0.0
    %526 = vmatpush1.xpose.msra.mxu0 0.0
    %527 = vmatprep.subr.mxu0 0.0
    %528 = vmatpush1.xpose.msra.mxu0 0.0
    %529 = vmatprep.subr.mxu0 0.0
    %530 = vmatpush1.xpose.msra.mxu0 0.0
    %531 = vmatprep.subr.mxu0 0.0
    %532 = vmatpush1.xpose.msra.mxu0 0.0
    %533 = vmatprep.subr.mxu0 0.0
    %534 = vmatpush1.xpose.msra.mxu0 0.0
    %535 = vmatprep.subr.mxu0 0.0
    %536 = vmatpush1.xpose.msra.mxu0 0.0
    %537 = vmatprep.subr.mxu0 0.0
    %538 = vmatpush1.xpose.msra.mxu0 0.0
    %539 = vmatprep.subr.mxu0 0.0
    %540 = vmatpush1.xpose.msra.mxu0 0.0
    %541 = vmatprep.subr.mxu0 0.0
    %542 = vmatpush1.xpose.msra.mxu0 0.0
    %543 = vmatprep.subr.mxu0 0.0
    %544 = vmatpush1.xpose.msra.mxu0 0.0
    %545 = vmatprep.subr.mxu0 0.0
    %546 = vmatpush1.xpose.msra.mxu0 0.0
    %547 = vmatprep.subr.mxu0 0.0
    %548 = vmatpush1.xpose.msra.mxu0 0.0
    %549 = vmatprep.subr.mxu0 0.0
    %550 = vmatpush1.xpose.msra.mxu0 0.0
    %551 = vmatprep.subr.mxu0 0.0
    %552 = vmatpush1.xpose.msra.mxu0 0.0
    %553 = vmatprep.subr.mxu0 0.0
    %554 = vmatpush1.xpose.msra.mxu0 0.0
    %555 = vmatprep.subr.mxu0 0.0
    %556 = vmatpush1.xpose.msra.mxu0 0.0
    %557 = vmatprep.subr.mxu0 0.0
    %558 = vmatpush1.xpose.msra.mxu0 0.0
    %559 = vmatprep.subr.mxu0 0.0
    %560 = vmatpush1.xpose.msra.mxu0 0.0
    %561 = vmatprep.subr.mxu0 0.0
    %562 = vmatpush1.xpose.msra.mxu0 0.0
    %563 = vmatprep.subr.mxu0 0.0
    %564 = vmatpush1.xpose.msra.mxu0 0.0
    %565 = vmatprep.subr.mxu0 0.0
    %566 = vmatpush1.xpose.msra.mxu0 0.0
    %567 = vmatprep.subr.mxu0 0.0
    %568 = vmatpush1.xpose.msra.mxu0 0.0
    %569 = vmatprep.mubr.f32.mxu0 0.0
    %570 = vmatmul.mubr.f32.gmra.mrb[0].mxu0 %v497
    %v571 = vpop.f32.mrb[0].mxu0
    %v572 = vadd.f32 %v58, %v571
    %v573 = vpop.f32.mrb[0].mxu0
    %574 = vmatprep.mubr.f32.mxu0 0.0
    %575 = vmatmul.mubr.f32.gmra.mrb[0].mxu0 %v499
    %v576 = vpop.f32.mrb[0].mxu0
    %v577 = vadd.f32 %v59, %v576
    %v578 = vpop.f32.mrb[0].mxu0
    %579 = vdwg.mxu0
    %v580 = vsel %vm295, %v572, -inf
    %581 = vmax.xlane.f32.xlu0 %v580
    %v582 = vpop.xlane.xlu0 %581
    %v583 = vsel %vm295, %v577, -inf
    %584 = vmax.xlane.f32.xlu0 %v583
    %v585 = vpop.xlane.xlu0 %584
    %v586 = vsub.f32 %v572, %v582
    %v587 = vsub.f32 %v577, %v585
    %v588 = vmul.f32 %v586, 1.442695
    %v589 = vpow.pop %v588
    %v590 = vmul.f32 %v587, 1.442695
    %v591 = vpow.pop %v590
    %v592 = vsel %vm295, %v589, 0.0
    %593 = vadd.xlane.f32.xlu0 %v592
    %v594 = vpop.xlane.xlu0 %593
    %v595 = vsel %vm295, %v591, 0.0
    %596 = vadd.xlane.f32.xlu0 %v595
    %v597 = vpop.xlane.xlu0 %596
    %v598 = vrcp.pop %v594
    %v599 = vrcp.pop %v597
    %v600 = vmul.f32 %v589, %v598
    %v601 = vmul.f32 %v591, %v599
    %602 = vrot.lane.b32.xlu0 %v197, 56
    %v603 = vpop.permute.xlu0 %602
    %604 = vrot.lane.b32.xlu0 %v202, 56
    %v605 = vpop.permute.xlu0 %604
    %v609 = vsel %vm295, %v600, 0
    %v612 = vsel %vm295, %v601, 0
    %614 = vmatprep.subr.mxu0 0.0
    %615 = vmatpush1.msra.mxu0 %v603
    %616 = vmatprep.subr.mxu0 0.0
    %617 = vmatpush1.msra.mxu0 %v605
    %618 = vmatprep.subr.mxu0 0.0
    %619 = vmatpush1.msra.mxu0 0.0
    %620 = vmatprep.subr.mxu0 0.0
    %621 = vmatpush1.msra.mxu0 0.0
    %622 = vmatprep.subr.mxu0 0.0
    %623 = vmatpush1.msra.mxu0 0.0
    %624 = vmatprep.subr.mxu0 0.0
    %625 = vmatpush1.msra.mxu0 0.0
    %626 = vmatprep.subr.mxu0 0.0
    %627 = vmatpush1.msra.mxu0 0.0
    %628 = vmatprep.subr.mxu0 0.0
    %629 = vmatpush1.msra.mxu0 0.0
    %630 = vmatprep.subr.mxu0 0.0
    %631 = vmatpush1.msra.mxu0 0.0
    %632 = vmatprep.subr.mxu0 0.0
    %633 = vmatpush1.msra.mxu0 0.0
    %634 = vmatprep.subr.mxu0 0.0
    %635 = vmatpush1.msra.mxu0 0.0
    %636 = vmatprep.subr.mxu0 0.0
    %637 = vmatpush1.msra.mxu0 0.0
    %638 = vmatprep.subr.mxu0 0.0
    %639 = vmatpush1.msra.mxu0 0.0
    %640 = vmatprep.subr.mxu0 0.0
    %641 = vmatpush1.msra.mxu0 0.0
    %642 = vmatprep.subr.mxu0 0.0
    %643 = vmatpush1.msra.mxu0 0.0
    %644 = vmatprep.subr.mxu0 0.0
    %645 = vmatpush1.msra.mxu0 0.0
    %646 = vmatprep.subr.mxu0 0.0
    %647 = vmatpush1.msra.mxu0 0.0
    %648 = vmatprep.subr.mxu0 0.0
    %649 = vmatpush1.msra.mxu0 0.0
    %650 = vmatprep.subr.mxu0 0.0
    %651 = vmatpush1.msra.mxu0 0.0
    %652 = vmatprep.subr.mxu0 0.0
    %653 = vmatpush1.msra.mxu0 0.0
    %654 = vmatprep.subr.mxu0 0.0
    %655 = vmatpush1.msra.mxu0 0.0
    %656 = vmatprep.subr.mxu0 0.0
    %657 = vmatpush1.msra.mxu0 0.0
    %658 = vmatprep.subr.mxu0 0.0
    %659 = vmatpush1.msra.mxu0 0.0
    %660 = vmatprep.subr.mxu0 0.0
    %661 = vmatpush1.msra.mxu0 0.0
    %662 = vmatprep.subr.mxu0 0.0
    %663 = vmatpush1.msra.mxu0 0.0
    %664 = vmatprep.subr.mxu0 0.0
    %665 = vmatpush1.msra.mxu0 0.0
    %666 = vmatprep.subr.mxu0 0.0
    %667 = vmatpush1.msra.mxu0 0.0
    %668 = vmatprep.subr.mxu0 0.0
    %669 = vmatpush1.msra.mxu0 0.0
    %670 = vmatprep.subr.mxu0 0.0
    %671 = vmatpush1.msra.mxu0 0.0
    %672 = vmatprep.subr.mxu0 0.0
    %673 = vmatpush1.msra.mxu0 0.0
    %674 = vmatprep.subr.mxu0 0.0
    %675 = vmatpush1.msra.mxu0 0.0
    %676 = vmatprep.subr.mxu0 0.0
    %677 = vmatpush1.msra.mxu0 0.0
    %678 = vmatprep.mubr.f32.mxu0 0.0
    %679 = vmatmul.mubr.f32.gmra.mrb[0].mxu0 %v609
    %v680 = vpop.f32.mrb[0].mxu0
    %v681 = vadd.f32 0.0, %v680
    %v682 = vpop.f32.mrb[0].mxu0
    %683 = vmatprep.mubr.f32.mxu0 0.0
    %684 = vmatmul.mubr.f32.gmra.mrb[0].mxu0 %v612
    %v685 = vpop.f32.mrb[0].mxu0
    %v686 = vadd.f32 0.0, %v685
    %v687 = vpop.f32.mrb[0].mxu0
    %688 = vdwg.mxu0
    %v689 = vld [vmem:[#allocation7 + $0xa8] sm:$0xff]
    %v691 = vsel %vm211, %v681, 0
    %v694 = vsel %vm211, %v686, 0
    %696 = vmatprep.subr.mxu0 0.0
    %697 = vmatpush1.msra.mxu0 %v689
    %698 = vmatprep.subr.mxu0 0.0
    %699 = vmatpush1.msra.mxu0 0.0
    %700 = vmatprep.subr.mxu0 0.0
    %701 = vmatpush1.msra.mxu0 0.0
    %702 = vmatprep.subr.mxu0 0.0
    %703 = vmatpush1.msra.mxu0 0.0
    %704 = vmatprep.subr.mxu0 0.0
    %705 = vmatpush1.msra.mxu0 0.0
    %706 = vmatprep.subr.mxu0 0.0
    %707 = vmatpush1.msra.mxu0 0.0
    %708 = vmatprep.subr.mxu0 0.0
    %709 = vmatpush1.msra.mxu0 0.0
    %710 = vmatprep.subr.mxu0 0.0
    %711 = vmatpush1.msra.mxu0 0.0
    %712 = vmatprep.subr.mxu0 0.0
    %713 = vmatpush1.msra.mxu0 0.0
    %714 = vmatprep.subr.mxu0 0.0
    %715 = vmatpush1.msra.mxu0 0.0
    %716 = vmatprep.subr.mxu0 0.0
    %717 = vmatpush1.msra.mxu0 0.0
    %718 = vmatprep.subr.mxu0 0.0
    %719 = vmatpush1.msra.mxu0 0.0
    %720 = vmatprep.subr.mxu0 0.0
    %721 = vmatpush1.msra.mxu0 0.0
    %722 = vmatprep.subr.mxu0 0.0
    %723 = vmatpush1.msra.mxu0 0.0
    %724 = vmatprep.subr.mxu0 0.0
    %725 = vmatpush1.msra.mxu0 0.0
    %726 = vmatprep.subr.mxu0 0.0
    %727 = vmatpush1.msra.mxu0 0.0
    %728 = vmatprep.subr.mxu0 0.0
    %729 = vmatpush1.msra.mxu0 0.0
    %730 = vmatprep.subr.mxu0 0.0
    %731 = vmatpush1.msra.mxu0 0.0
    %732 = vmatprep.subr.mxu0 0.0
    %733 = vmatpush1.msra.mxu0 0.0
    %734 = vmatprep.subr.mxu0 0.0
    %735 = vmatpush1.msra.mxu0 0.0
    %736 = vmatprep.subr.mxu0 0.0
    %737 = vmatpush1.msra.mxu0 0.0
    %738 = vmatprep.subr.mxu0 0.0
    %739 = vmatpush1.msra.mxu0 0.0
    %740 = vmatprep.subr.mxu0 0.0
    %741 = vmatpush1.msra.mxu0 0.0
    %742 = vmatprep.subr.mxu0 0.0
    %743 = vmatpush1.msra.mxu0 0.0
    %744 = vmatprep.subr.mxu0 0.0
    %745 = vmatpush1.msra.mxu0 0.0
    %746 = vmatprep.subr.mxu0 0.0
    %747 = vmatpush1.msra.mxu0 0.0
    %748 = vmatprep.subr.mxu0 0.0
    %749 = vmatpush1.msra.mxu0 0.0
    %750 = vmatprep.subr.mxu0 0.0
    %751 = vmatpush1.msra.mxu0 0.0
    %752 = vmatprep.subr.mxu0 0.0
    %753 = vmatpush1.msra.mxu0 0.0
    %754 = vmatprep.subr.mxu0 0.0
    %755 = vmatpush1.msra.mxu0 0.0
    %756 = vmatprep.subr.mxu0 0.0
    %757 = vmatpush1.msra.mxu0 0.0
    %758 = vmatprep.subr.mxu0 0.0
    %759 = vmatpush1.msra.mxu0 0.0
    %760 = vmatprep.mubr.f32.mxu0 0.0
    %761 = vmatmul.mubr.f32.gmra.mrb[0].mxu0 %v691
    %v762 = vpop.f32.mrb[0].mxu0
    %v763 = vadd.f32 0.0, %v762
    %v764 = vpop.f32.mrb[0].mxu0
    %765 = vmatprep.mubr.f32.mxu0 0.0
    %766 = vmatmul.mubr.f32.gmra.mrb[0].mxu0 %v694
    %v767 = vpop.f32.mrb[0].mxu0
    %v768 = vadd.f32 0.0, %v767
    %v769 = vpop.f32.mrb[0].mxu0
    %770 = vdwg.mxu0
    %v771 = vadd.f32 %v487, %v763
    %v772 = vadd.f32 %v488, %v768
    %773 = vrot.lane.b32.xlu0 %v197, 112
    %v774 = vpop.permute.xlu0 %773
    %775 = vrot.lane.b32.xlu0 %v202, 112
    %v776 = vpop.permute.xlu0 %775
    %777 = vrot.lane.b32.xlu0 %v197, 80
    %v778 = vpop.permute.xlu0 %777
    %779 = vrot.lane.b32.xlu0 %v202, 80
    %v780 = vpop.permute.xlu0 %779
    %v781 = vsel %vm211, %v774, 0
    %v783 = vsel %vm211, %v776, 0
    %v785 = vsel %vm211, %v778, 0
    %v787 = vsel %vm211, %v780, 0
    %789 = vmatprep.subr.mxu0 0.0
    %790 = vmatpush1.xpose.msra.mxu0 %v785
    %791 = vmatprep.subr.mxu0 0.0
    %792 = vmatpush1.xpose.msra.mxu0 %v787
    %793 = vmatprep.subr.mxu0 0.0
    %794 = vmatpush1.xpose.msra.mxu0 0.0
    %795 = vmatprep.subr.mxu0 0.0
    %796 = vmatpush1.xpose.msra.mxu0 0.0
    %797 = vmatprep.subr.mxu0 0.0
    %798 = vmatpush1.xpose.msra.mxu0 0.0
    %799 = vmatprep.subr.mxu0 0.0
    %800 = vmatpush1.xpose.msra.mxu0 0.0
    %801 = vmatprep.subr.mxu0 0.0
    %802 = vmatpush1.xpose.msra.mxu0 0.0
    %803 = vmatprep.subr.mxu0 0.0
    %804 = vmatpush1.xpose.msra.mxu0 0.0
    %805 = vmatprep.subr.mxu0 0.0
    %806 = vmatpush1.xpose.msra.mxu0 0.0
    %807 = vmatprep.subr.mxu0 0.0
    %808 = vmatpush1.xpose.msra.mxu0 0.0
    %809 = vmatprep.subr.mxu0 0.0
    %810 = vmatpush1.xpose.msra.mxu0 0.0
    %811 = vmatprep.subr.mxu0 0.0
    %812 = vmatpush1.xpose.msra.mxu0 0.0
    %813 = vmatprep.subr.mxu0 0.0
    %814 = vmatpush1.xpose.msra.mxu0 0.0
    %815 = vmatprep.subr.mxu0 0.0
    %816 = vmatpush1.xpose.msra.mxu0 0.0
    %817 = vmatprep.subr.mxu0 0.0
    %818 = vmatpush1.xpose.msra.mxu0 0.0
    %819 = vmatprep.subr.mxu0 0.0
    %820 = vmatpush1.xpose.msra.mxu0 0.0
    %821 = vmatprep.subr.mxu0 0.0
    %822 = vmatpush1.xpose.msra.mxu0 0.0
    %823 = vmatprep.subr.mxu0 0.0
    %824 = vmatpush1.xpose.msra.mxu0 0.0
    %825 = vmatprep.subr.mxu0 0.0
    %826 = vmatpush1.xpose.msra.mxu0 0.0
    %827 = vmatprep.subr.mxu0 0.0
    %828 = vmatpush1.xpose.msra.mxu0 0.0
    %829 = vmatprep.subr.mxu0 0.0
    %830 = vmatpush1.xpose.msra.mxu0 0.0
    %831 = vmatprep.subr.mxu0 0.0
    %832 = vmatpush1.xpose.msra.mxu0 0.0
    %833 = vmatprep.subr.mxu0 0.0
    %834 = vmatpush1.xpose.msra.mxu0 0.0
    %835 = vmatprep.subr.mxu0 0.0
    %836 = vmatpush1.xpose.msra.mxu0 0.0
    %837 = vmatprep.subr.mxu0 0.0
    %838 = vmatpush1.xpose.msra.mxu0 0.0
    %839 = vmatprep.subr.mxu0 0.0
    %840 = vmatpush1.xpose.msra.mxu0 0.0
    %841 = vmatprep.subr.mxu0 0.0
    %842 = vmatpush1.xpose.msra.mxu0 0.0
    %843 = vmatprep.subr.mxu0 0.0
    %844 = vmatpush1.xpose.msra.mxu0 0.0
    %845 = vmatprep.subr.mxu0 0.0
    %846 = vmatpush1.xpose.msra.mxu0 0.0
    %847 = vmatprep.subr.mxu0 0.0
    %848 = vmatpush1.xpose.msra.mxu0 0.0
    %849 = vmatprep.subr.mxu0 0.0
    %850 = vmatpush1.xpose.msra.mxu0 0.0
    %851 = vmatprep.subr.mxu0 0.0
    %852 = vmatpush1.xpose.msra.mxu0 0.0
    %853 = vmatprep.mubr.f32.mxu0 0.0
    %854 = vmatmul.mubr.f32.gmra.mrb[0].mxu0 %v781
    %v855 = vpop.f32.mrb[0].mxu0
    %v856 = vadd.f32 %v58, %v855
    %v857 = vpop.f32.mrb[0].mxu0
    %858 = vmatprep.mubr.f32.mxu0 0.0
    %859 = vmatmul.mubr.f32.gmra.mrb[0].mxu0 %v783
    %v860 = vpop.f32.mrb[0].mxu0
    %v861 = vadd.f32 %v59, %v860
    %v862 = vpop.f32.mrb[0].mxu0
    %863 = vdwg.mxu0
    %v864 = vsel %vm295, %v856, -inf
    %865 = vmax.xlane.f32.xlu0 %v864
    %v866 = vpop.xlane.xlu0 %865
    %v867 = vsel %vm295, %v861, -inf
    %868 = vmax.xlane.f32.xlu0 %v867
    %v869 = vpop.xlane.xlu0 %868
    %v870 = vsub.f32 %v856, %v866
    %v871 = vsub.f32 %v861, %v869
    %v872 = vmul.f32 %v870, 1.442695
    %v873 = vpow.pop %v872
    %v874 = vmul.f32 %v871, 1.442695
    %v875 = vpow.pop %v874
    %v876 = vsel %vm295, %v873, 0.0
    %877 = vadd.xlane.f32.xlu0 %v876
    %v878 = vpop.xlane.xlu0 %877
    %v879 = vsel %vm295, %v875, 0.0
    %880 = vadd.xlane.f32.xlu0 %v879
    %v881 = vpop.xlane.xlu0 %880
    %v882 = vrcp.pop %v878
    %v883 = vrcp.pop %v881
    %v884 = vmul.f32 %v873, %v882
    %v885 = vmul.f32 %v875, %v883
    %886 = vrot.lane.b32.xlu0 %v197, 48
    %v887 = vpop.permute.xlu0 %886
    %888 = vrot.lane.b32.xlu0 %v202, 48
    %v889 = vpop.permute.xlu0 %888
    %v893 = vsel %vm295, %v884, 0
    %v896 = vsel %vm295, %v885, 0
    %898 = vmatprep.subr.mxu0 0.0
    %899 = vmatpush1.msra.mxu0 %v887
    %900 = vmatprep.subr.mxu0 0.0
    %901 = vmatpush1.msra.mxu0 %v889
    %902 = vmatprep.subr.mxu0 0.0
    %903 = vmatpush1.msra.mxu0 0.0
    %904 = vmatprep.subr.mxu0 0.0
    %905 = vmatpush1.msra.mxu0 0.0
    %906 = vmatprep.subr.mxu0 0.0
    %907 = vmatpush1.msra.mxu0 0.0
    %908 = vmatprep.subr.mxu0 0.0
    %909 = vmatpush1.msra.mxu0 0.0
    %910 = vmatprep.subr.mxu0 0.0
    %911 = vmatpush1.msra.mxu0 0.0
    %912 = vmatprep.subr.mxu0 0.0
    %913 = vmatpush1.msra.mxu0 0.0
    %914 = vmatprep.subr.mxu0 0.0
    %915 = vmatpush1.msra.mxu0 0.0
    %916 = vmatprep.subr.mxu0 0.0
    %917 = vmatpush1.msra.mxu0 0.0
    %918 = vmatprep.subr.mxu0 0.0
    %919 = vmatpush1.msra.mxu0 0.0
    %920 = vmatprep.subr.mxu0 0.0
    %921 = vmatpush1.msra.mxu0 0.0
    %922 = vmatprep.subr.mxu0 0.0
    %923 = vmatpush1.msra.mxu0 0.0
    %924 = vmatprep.subr.mxu0 0.0
    %925 = vmatpush1.msra.mxu0 0.0
    %926 = vmatprep.subr.mxu0 0.0
    %927 = vmatpush1.msra.mxu0 0.0
    %928 = vmatprep.subr.mxu0 0.0
    %929 = vmatpush1.msra.mxu0 0.0
    %930 = vmatprep.subr.mxu0 0.0
    %931 = vmatpush1.msra.mxu0 0.0
    %932 = vmatprep.subr.mxu0 0.0
    %933 = vmatpush1.msra.mxu0 0.0
    %934 = vmatprep.subr.mxu0 0.0
    %935 = vmatpush1.msra.mxu0 0.0
    %936 = vmatprep.subr.mxu0 0.0
    %937 = vmatpush1.msra.mxu0 0.0
    %938 = vmatprep.subr.mxu0 0.0
    %939 = vmatpush1.msra.mxu0 0.0
    %940 = vmatprep.subr.mxu0 0.0
    %941 = vmatpush1.msra.mxu0 0.0
    %942 = vmatprep.subr.mxu0 0.0
    %943 = vmatpush1.msra.mxu0 0.0
    %944 = vmatprep.subr.mxu0 0.0
    %945 = vmatpush1.msra.mxu0 0.0
    %946 = vmatprep.subr.mxu0 0.0
    %947 = vmatpush1.msra.mxu0 0.0
    %948 = vmatprep.subr.mxu0 0.0
    %949 = vmatpush1.msra.mxu0 0.0
    %950 = vmatprep.subr.mxu0 0.0
    %951 = vmatpush1.msra.mxu0 0.0
    %952 = vmatprep.subr.mxu0 0.0
    %953 = vmatpush1.msra.mxu0 0.0
    %954 = vmatprep.subr.mxu0 0.0
    %955 = vmatpush1.msra.mxu0 0.0
    %956 = vmatprep.subr.mxu0 0.0
    %957 = vmatpush1.msra.mxu0 0.0
    %958 = vmatprep.subr.mxu0 0.0
    %959 = vmatpush1.msra.mxu0 0.0
    %960 = vmatprep.subr.mxu0 0.0
    %961 = vmatpush1.msra.mxu0 0.0
    %962 = vmatprep.mubr.f32.mxu0 0.0
    %963 = vmatmul.mubr.f32.gmra.mrb[0].mxu0 %v893
    %v964 = vpop.f32.mrb[0].mxu0
    %v965 = vadd.f32 0.0, %v964
    %v966 = vpop.f32.mrb[0].mxu0
    %967 = vmatprep.mubr.f32.mxu0 0.0
    %968 = vmatmul.mubr.f32.gmra.mrb[0].mxu0 %v896
    %v969 = vpop.f32.mrb[0].mxu0
    %v970 = vadd.f32 0.0, %v969
    %v971 = vpop.f32.mrb[0].mxu0
    %972 = vdwg.mxu0
    %v973 = vld [vmem:[#allocation7 + $0xb0] sm:$0xff]
    %v975 = vsel %vm211, %v965, 0
    %v978 = vsel %vm211, %v970, 0
    %980 = vmatprep.subr.mxu0 0.0
    %981 = vmatpush1.msra.mxu0 %v973
    %982 = vmatprep.subr.mxu0 0.0
    %983 = vmatpush1.msra.mxu0 0.0
    %984 = vmatprep.subr.mxu0 0.0
    %985 = vmatpush1.msra.mxu0 0.0
    %986 = vmatprep.subr.mxu0 0.0
    %987 = vmatpush1.msra.mxu0 0.0
    %988 = vmatprep.subr.mxu0 0.0
    %989 = vmatpush1.msra.mxu0 0.0
    %990 = vmatprep.subr.mxu0 0.0
    %991 = vmatpush1.msra.mxu0 0.0
    %992 = vmatprep.subr.mxu0 0.0
    %993 = vmatpush1.msra.mxu0 0.0
    %994 = vmatprep.subr.mxu0 0.0
    %995 = vmatpush1.msra.mxu0 0.0
    %996 = vmatprep.subr.mxu0 0.0
    %997 = vmatpush1.msra.mxu0 0.0
    %998 = vmatprep.subr.mxu0 0.0
    %999 = vmatpush1.msra.mxu0 0.0
    %1000 = vmatprep.subr.mxu0 0.0
    %1001 = vmatpush1.msra.mxu0 0.0
    %1002 = vmatprep.subr.mxu0 0.0
    %1003 = vmatpush1.msra.mxu0 0.0
    %1004 = vmatprep.subr.mxu0 0.0
    %1005 = vmatpush1.msra.mxu0 0.0
    %1006 = vmatprep.subr.mxu0 0.0
    %1007 = vmatpush1.msra.mxu0 0.0
    %1008 = vmatprep.subr.mxu0 0.0
    %1009 = vmatpush1.msra.mxu0 0.0
    %1010 = vmatprep.subr.mxu0 0.0
    %1011 = vmatpush1.msra.mxu0 0.0
    %1012 = vmatprep.subr.mxu0 0.0
    %1013 = vmatpush1.msra.mxu0 0.0
    %1014 = vmatprep.subr.mxu0 0.0
    %1015 = vmatpush1.msra.mxu0 0.0
    %1016 = vmatprep.subr.mxu0 0.0
    %1017 = vmatpush1.msra.mxu0 0.0
    %1018 = vmatprep.subr.mxu0 0.0
    %1019 = vmatpush1.msra.mxu0 0.0
    %1020 = vmatprep.subr.mxu0 0.0
    %1021 = vmatpush1.msra.mxu0 0.0
    %1022 = vmatprep.subr.mxu0 0.0
    %1023 = vmatpush1.msra.mxu0 0.0
    %1024 = vmatprep.subr.mxu0 0.0
    %1025 = vmatpush1.msra.mxu0 0.0
    %1026 = vmatprep.subr.mxu0 0.0
    %1027 = vmatpush1.msra.mxu0 0.0
    %1028 = vmatprep.subr.mxu0 0.0
    %1029 = vmatpush1.msra.mxu0 0.0
    %1030 = vmatprep.subr.mxu0 0.0
    %1031 = vmatpush1.msra.mxu0 0.0
    %1032 = vmatprep.subr.mxu0 0.0
    %1033 = vmatpush1.msra.mxu0 0.0
    %1034 = vmatprep.subr.mxu0 0.0
    %1035 = vmatpush1.msra.mxu0 0.0
    %1036 = vmatprep.subr.mxu0 0.0
    %1037 = vmatpush1.msra.mxu0 0.0
    %1038 = vmatprep.subr.mxu0 0.0
    %1039 = vmatpush1.msra.mxu0 0.0
    %1040 = vmatprep.subr.mxu0 0.0
    %1041 = vmatpush1.msra.mxu0 0.0
    %1042 = vmatprep.subr.mxu0 0.0
    %1043 = vmatpush1.msra.mxu0 0.0
    %1044 = vmatprep.mubr.f32.mxu0 0.0
    %1045 = vmatmul.mubr.f32.gmra.mrb[0].mxu0 %v975
    %v1046 = vpop.f32.mrb[0].mxu0
    %v1047 = vadd.f32 0.0, %v1046
    %v1048 = vpop.f32.mrb[0].mxu0
    %1049 = vmatprep.mubr.f32.mxu0 0.0
    %1050 = vmatmul.mubr.f32.gmra.mrb[0].mxu0 %v978
    %v1051 = vpop.f32.mrb[0].mxu0
    %v1052 = vadd.f32 0.0, %v1051
    %v1053 = vpop.f32.mrb[0].mxu0
    %1054 = vdwg.mxu0
    %v1055 = vadd.f32 %v771, %v1047
    %v1056 = vadd.f32 %v772, %v1052
    %1057 = vrot.lane.b32.xlu0 %v197, 104
    %v1058 = vpop.permute.xlu0 %1057
    %1059 = vrot.lane.b32.xlu0 %v202, 104
    %v1060 = vpop.permute.xlu0 %1059
    %1061 = vrot.lane.b32.xlu0 %v197, 72
    %v1062 = vpop.permute.xlu0 %1061
    %1063 = vrot.lane.b32.xlu0 %v202, 72
    %v1064 = vpop.permute.xlu0 %1063
    %v1065 = vsel %vm211, %v1058, 0
    %v1067 = vsel %vm211, %v1060, 0
    %v1069 = vsel %vm211, %v1062, 0
    %v1071 = vsel %vm211, %v1064, 0
    %1073 = vmatprep.subr.mxu0 0.0
    %1074 = vmatpush1.xpose.msra.mxu0 %v1069
    %1075 = vmatprep.subr.mxu0 0.0
    %1076 = vmatpush1.xpose.msra.mxu0 %v1071
    %1077 = vmatprep.subr.mxu0 0.0
    %1078 = vmatpush1.xpose.msra.mxu0 0.0
    %1079 = vmatprep.subr.mxu0 0.0
    %1080 = vmatpush1.xpose.msra.mxu0 0.0
    %1081 = vmatprep.subr.mxu0 0.0
    %1082 = vmatpush1.xpose.msra.mxu0 0.0
    %1083 = vmatprep.subr.mxu0 0.0
    %1084 = vmatpush1.xpose.msra.mxu0 0.0
    %1085 = vmatprep.subr.mxu0 0.0
    %1086 = vmatpush1.xpose.msra.mxu0 0.0
    %1087 = vmatprep.subr.mxu0 0.0
    %1088 = vmatpush1.xpose.msra.mxu0 0.0
    %1089 = vmatprep.subr.mxu0 0.0
    %1090 = vmatpush1.xpose.msra.mxu0 0.0
    %1091 = vmatprep.subr.mxu0 0.0
    %1092 = vmatpush1.xpose.msra.mxu0 0.0
    %1093 = vmatprep.subr.mxu0 0.0
    %1094 = vmatpush1.xpose.msra.mxu0 0.0
    %1095 = vmatprep.subr.mxu0 0.0
    %1096 = vmatpush1.xpose.msra.mxu0 0.0
    %1097 = vmatprep.subr.mxu0 0.0
    %1098 = vmatpush1.xpose.msra.mxu0 0.0
    %1099 = vmatprep.subr.mxu0 0.0
    %1100 = vmatpush1.xpose.msra.mxu0 0.0
    %1101 = vmatprep.subr.mxu0 0.0
    %1102 = vmatpush1.xpose.msra.mxu0 0.0
    %1103 = vmatprep.subr.mxu0 0.0
    %1104 = vmatpush1.xpose.msra.mxu0 0.0
    %1105 = vmatprep.subr.mxu0 0.0
    %1106 = vmatpush1.xpose.msra.mxu0 0.0
    %1107 = vmatprep.subr.mxu0 0.0
    %1108 = vmatpush1.xpose.msra.mxu0 0.0
    %1109 = vmatprep.subr.mxu0 0.0
    %1110 = vmatpush1.xpose.msra.mxu0 0.0
    %1111 = vmatprep.subr.mxu0 0.0
    %1112 = vmatpush1.xpose.msra.mxu0 0.0
    %1113 = vmatprep.subr.mxu0 0.0
    %1114 = vmatpush1.xpose.msra.mxu0 0.0
    %1115 = vmatprep.subr.mxu0 0.0
    %1116 = vmatpush1.xpose.msra.mxu0 0.0
    %1117 = vmatprep.subr.mxu0 0.0
    %1118 = vmatpush1.xpose.msra.mxu0 0.0
    %1119 = vmatprep.subr.mxu0 0.0
    %1120 = vmatpush1.xpose.msra.mxu0 0.0
    %1121 = vmatprep.subr.mxu0 0.0
    %1122 = vmatpush1.xpose.msra.mxu0 0.0
    %1123 = vmatprep.subr.mxu0 0.0
    %1124 = vmatpush1.xpose.msra.mxu0 0.0
    %1125 = vmatprep.subr.mxu0 0.0
    %1126 = vmatpush1.xpose.msra.mxu0 0.0
    %1127 = vmatprep.subr.mxu0 0.0
    %1128 = vmatpush1.xpose.msra.mxu0 0.0
    %1129 = vmatprep.subr.mxu0 0.0
    %1130 = vmatpush1.xpose.msra.mxu0 0.0
    %1131 = vmatprep.subr.mxu0 0.0
    %1132 = vmatpush1.xpose.msra.mxu0 0.0
    %1133 = vmatprep.subr.mxu0 0.0
    %1134 = vmatpush1.xpose.msra.mxu0 0.0
    %1135 = vmatprep.subr.mxu0 0.0
    %1136 = vmatpush1.xpose.msra.mxu0 0.0
    %1137 = vmatprep.mubr.f32.mxu0 0.0
    %1138 = vmatmul.mubr.f32.gmra.mrb[0].mxu0 %v1065
    %v1139 = vpop.f32.mrb[0].mxu0
    %v1140 = vadd.f32 %v58, %v1139
    %v1141 = vpop.f32.mrb[0].mxu0
    %1142 = vmatprep.mubr.f32.mxu0 0.0
    %1143 = vmatmul.mubr.f32.gmra.mrb[0].mxu0 %v1067
    %v1144 = vpop.f32.mrb[0].mxu0
    %v1145 = vadd.f32 %v59, %v1144
    %v1146 = vpop.f32.mrb[0].mxu0
    %1147 = vdwg.mxu0
    %v1148 = vsel %vm295, %v1140, -inf
    %1149 = vmax.xlane.f32.xlu0 %v1148
    %v1150 = vpop.xlane.xlu0 %1149
    %v1151 = vsel %vm295, %v1145, -inf
    %1152 = vmax.xlane.f32.xlu0 %v1151
    %v1153 = vpop.xlane.xlu0 %1152
    %v1154 = vsub.f32 %v1140, %v1150
    %v1155 = vsub.f32 %v1145, %v1153
    %v1156 = vmul.f32 %v1154, 1.442695
    %v1157 = vpow.pop %v1156
    %v1158 = vmul.f32 %v1155, 1.442695
    %v1159 = vpow.pop %v1158
    %v1160 = vsel %vm295, %v1157, 0.0
    %1161 = vadd.xlane.f32.xlu0 %v1160
    %v1162 = vpop.xlane.xlu0 %1161
    %v1163 = vsel %vm295, %v1159, 0.0
    %1164 = vadd.xlane.f32.xlu0 %v1163
    %v1165 = vpop.xlane.xlu0 %1164
    %v1166 = vrcp.pop %v1162
    %v1167 = vrcp.pop %v1165
    %v1168 = vmul.f32 %v1157, %v1166
    %v1169 = vmul.f32 %v1159, %v1167
    %1170 = vrot.lane.b32.xlu0 %v197, 40
    %v1171 = vpop.permute.xlu0 %1170
    %1172 = vrot.lane.b32.xlu0 %v202, 40
    %v1173 = vpop.permute.xlu0 %1172
    %v1177 = vsel %vm295, %v1168, 0
    %v1180 = vsel %vm295, %v1169, 0
    %1182 = vmatprep.subr.mxu0 0.0
    %1183 = vmatpush1.msra.mxu0 %v1171
    %1184 = vmatprep.subr.mxu0 0.0
    %1185 = vmatpush1.msra.mxu0 %v1173
    %1186 = vmatprep.subr.mxu0 0.0
    %1187 = vmatpush1.msra.mxu0 0.0
    %1188 = vmatprep.subr.mxu0 0.0
    %1189 = vmatpush1.msra.mxu0 0.0
    %1190 = vmatprep.subr.mxu0 0.0
    %1191 = vmatpush1.msra.mxu0 0.0
    %1192 = vmatprep.subr.mxu0 0.0
    %1193 = vmatpush1.msra.mxu0 0.0
    %1194 = vmatprep.subr.mxu0 0.0
    %1195 = vmatpush1.msra.mxu0 0.0
    %1196 = vmatprep.subr.mxu0 0.0
    %1197 = vmatpush1.msra.mxu0 0.0
    %1198 = vmatprep.subr.mxu0 0.0
    %1199 = vmatpush1.msra.mxu0 0.0
    %1200 = vmatprep.subr.mxu0 0.0
    %1201 = vmatpush1.msra.mxu0 0.0
    %1202 = vmatprep.subr.mxu0 0.0
    %1203 = vmatpush1.msra.mxu0 0.0
    %1204 = vmatprep.subr.mxu0 0.0
    %1205 = vmatpush1.msra.mxu0 0.0
    %1206 = vmatprep.subr.mxu0 0.0
    %1207 = vmatpush1.msra.mxu0 0.0
    %1208 = vmatprep.subr.mxu0 0.0
    %1209 = vmatpush1.msra.mxu0 0.0
    %1210 = vmatprep.subr.mxu0 0.0
    %1211 = vmatpush1.msra.mxu0 0.0
    %1212 = vmatprep.subr.mxu0 0.0
    %1213 = vmatpush1.msra.mxu0 0.0
    %1214 = vmatprep.subr.mxu0 0.0
    %1215 = vmatpush1.msra.mxu0 0.0
    %1216 = vmatprep.subr.mxu0 0.0
    %1217 = vmatpush1.msra.mxu0 0.0
    %1218 = vmatprep.subr.mxu0 0.0
    %1219 = vmatpush1.msra.mxu0 0.0
    %1220 = vmatprep.subr.mxu0 0.0
    %1221 = vmatpush1.msra.mxu0 0.0
    %1222 = vmatprep.subr.mxu0 0.0
    %1223 = vmatpush1.msra.mxu0 0.0
    %1224 = vmatprep.subr.mxu0 0.0
    %1225 = vmatpush1.msra.mxu0 0.0
    %1226 = vmatprep.subr.mxu0 0.0
    %1227 = vmatpush1.msra.mxu0 0.0
    %1228 = vmatprep.subr.mxu0 0.0
    %1229 = vmatpush1.msra.mxu0 0.0
    %1230 = vmatprep.subr.mxu0 0.0
    %1231 = vmatpush1.msra.mxu0 0.0
    %1232 = vmatprep.subr.mxu0 0.0
    %1233 = vmatpush1.msra.mxu0 0.0
    %1234 = vmatprep.subr.mxu0 0.0
    %1235 = vmatpush1.msra.mxu0 0.0
    %1236 = vmatprep.subr.mxu0 0.0
    %1237 = vmatpush1.msra.mxu0 0.0
    %1238 = vmatprep.subr.mxu0 0.0
    %1239 = vmatpush1.msra.mxu0 0.0
    %1240 = vmatprep.subr.mxu0 0.0
    %1241 = vmatpush1.msra.mxu0 0.0
    %1242 = vmatprep.subr.mxu0 0.0
    %1243 = vmatpush1.msra.mxu0 0.0
    %1244 = vmatprep.subr.mxu0 0.0
    %1245 = vmatpush1.msra.mxu0 0.0
    %1246 = vmatprep.mubr.f32.mxu0 0.0
    %1247 = vmatmul.mubr.f32.gmra.mrb[0].mxu0 %v1177
    %v1248 = vpop.f32.mrb[0].mxu0
    %v1249 = vadd.f32 0.0, %v1248
    %v1250 = vpop.f32.mrb[0].mxu0
    %1251 = vmatprep.mubr.f32.mxu0 0.0
    %1252 = vmatmul.mubr.f32.gmra.mrb[0].mxu0 %v1180
    %v1253 = vpop.f32.mrb[0].mxu0
    %v1254 = vadd.f32 0.0, %v1253
    %v1255 = vpop.f32.mrb[0].mxu0
    %1256 = vdwg.mxu0
    %v1257 = vld [vmem:[#allocation7 + $0xb8] sm:$0xff]
    %v1259 = vsel %vm211, %v1249, 0
    %v1262 = vsel %vm211, %v1254, 0
    %1264 = vmatprep.subr.mxu0 0.0
    %1265 = vmatpush1.msra.mxu0 %v1257
    %1266 = vmatprep.subr.mxu0 0.0
    %1267 = vmatpush1.msra.mxu0 0.0
    %1268 = vmatprep.subr.mxu0 0.0
    %1269 = vmatpush1.msra.mxu0 0.0
    %1270 = vmatprep.subr.mxu0 0.0
    %1271 = vmatpush1.msra.mxu0 0.0
    %1272 = vmatprep.subr.mxu0 0.0
    %1273 = vmatpush1.msra.mxu0 0.0
    %1274 = vmatprep.subr.mxu0 0.0
    %1275 = vmatpush1.msra.mxu0 0.0
    %1276 = vmatprep.subr.mxu0 0.0
    %1277 = vmatpush1.msra.mxu0 0.0
    %1278 = vmatprep.subr.mxu0 0.0
    %1279 = vmatpush1.msra.mxu0 0.0
    %1280 = vmatprep.subr.mxu0 0.0
    %1281 = vmatpush1.msra.mxu0 0.0
    %1282 = vmatprep.subr.mxu0 0.0
    %1283 = vmatpush1.msra.mxu0 0.0
    %1284 = vmatprep.subr.mxu0 0.0
    %1285 = vmatpush1.msra.mxu0 0.0
    %1286 = vmatprep.subr.mxu0 0.0
    %1287 = vmatpush1.msra.mxu0 0.0
    %1288 = vmatprep.subr.mxu0 0.0
    %1289 = vmatpush1.msra.mxu0 0.0
    %1290 = vmatprep.subr.mxu0 0.0
    %1291 = vmatpush1.msra.mxu0 0.0
    %1292 = vmatprep.subr.mxu0 0.0
    %1293 = vmatpush1.msra.mxu0 0.0
    %1294 = vmatprep.subr.mxu0 0.0
    %1295 = vmatpush1.msra.mxu0 0.0
    %1296 = vmatprep.subr.mxu0 0.0
    %1297 = vmatpush1.msra.mxu0 0.0
    %1298 = vmatprep.subr.mxu0 0.0
    %1299 = vmatpush1.msra.mxu0 0.0
    %1300 = vmatprep.subr.mxu0 0.0
    %1301 = vmatpush1.msra.mxu0 0.0
    %1302 = vmatprep.subr.mxu0 0.0
    %1303 = vmatpush1.msra.mxu0 0.0
    %1304 = vmatprep.subr.mxu0 0.0
    %1305 = vmatpush1.msra.mxu0 0.0
    %1306 = vmatprep.subr.mxu0 0.0
    %1307 = vmatpush1.msra.mxu0 0.0
    %1308 = vmatprep.subr.mxu0 0.0
    %1309 = vmatpush1.msra.mxu0 0.0
    %1310 = vmatprep.subr.mxu0 0.0
    %1311 = vmatpush1.msra.mxu0 0.0
    %1312 = vmatprep.subr.mxu0 0.0
    %1313 = vmatpush1.msra.mxu0 0.0
    %1314 = vmatprep.subr.mxu0 0.0
    %1315 = vmatpush1.msra.mxu0 0.0
    %1316 = vmatprep.subr.mxu0 0.0
    %1317 = vmatpush1.msra.mxu0 0.0
    %1318 = vmatprep.subr.mxu0 0.0
    %1319 = vmatpush1.msra.mxu0 0.0
    %1320 = vmatprep.subr.mxu0 0.0
    %1321 = vmatpush1.msra.mxu0 0.0
    %1322 = vmatprep.subr.mxu0 0.0
    %1323 = vmatpush1.msra.mxu0 0.0
    %1324 = vmatprep.subr.mxu0 0.0
    %1325 = vmatpush1.msra.mxu0 0.0
    %1326 = vmatprep.subr.mxu0 0.0
    %1327 = vmatpush1.msra.mxu0 0.0
    %1328 = vmatprep.mubr.f32.mxu0 0.0
    %1329 = vmatmul.mubr.f32.gmra.mrb[0].mxu0 %v1259
    %v1330 = vpop.f32.mrb[0].mxu0
    %v1331 = vadd.f32 0.0, %v1330
    %v1332 = vpop.f32.mrb[0].mxu0
    %1333 = vmatprep.mubr.f32.mxu0 0.0
    %1334 = vmatmul.mubr.f32.gmra.mrb[0].mxu0 %v1262
    %v1335 = vpop.f32.mrb[0].mxu0
    %v1336 = vadd.f32 0.0, %v1335
    %v1337 = vpop.f32.mrb[0].mxu0
    %1338 = vdwg.mxu0
    %v1339 = vadd.f32 %v1055, %v1331
    %v1340 = vadd.f32 %v1056, %v1336
    %v1341 = vadd.f32 %v56, %v1339
    %v1342 = vadd.f32 %v57, %v1340
    %v1343 = vsel %vm92, %v1341, 0.0
    %1344 = vadd.xlane.f32.xlu0 %v1343
    %v1345 = vpop.xlane.xlu0 %1344
    %v1346 = vsel %vm92, %v1342, 0.0
    %1347 = vadd.xlane.f32.xlu0 %v1346
    %v1348 = vpop.xlane.xlu0 %1347
    %v1349 = vmul.f32 %v1345, %v99
    %v1350 = vmul.f32 %v1348, %v99
    %v1351 = vsub.f32 %v1341, %v1349
    %v1352 = vsub.f32 %v1342, %v1350
    %v1353 = vmul.f32 %v1351, %v1351
    %v1354 = vmul.f32 %v1352, %v1352
    %v1355 = vsel %vm92, %v1353, 0.0
    %1356 = vadd.xlane.f32.xlu0 %v1355
    %v1357 = vpop.xlane.xlu0 %1356
    %v1358 = vsel %vm92, %v1354, 0.0
    %1359 = vadd.xlane.f32.xlu0 %v1358
    %v1360 = vpop.xlane.xlu0 %1359
    %v1361 = vmul.f32 %v1357, %v99
    %v1362 = vmul.f32 %v1360, %v99
    %v1363 = vadd.f32 %v1361, 1e-05
    %v1364 = vadd.f32 %v1362, 1e-05
    %v1365 = vrsqrt.pop %v1363
    %v1366 = vrsqrt.pop %v1364
    %v1367 = vmul.f32 %v1351, %v1365
    %v1368 = vmul.f32 %v1352, %v1366
    %v1369 = vmul.f32 %v1367, %v64
    %v1370 = vmul.f32 %v1368, %v65
    %v1371 = vadd.f32 %v1369, %v66
    %v1372 = vadd.f32 %v1370, %v67
    %v1374 = vsel %vm92, %v1371, 0
    %v1377 = vsel %vm92, %v1372, 0
    %1379 = vmatprep.subr.mxu0 0.0
    %1380 = vmatpush1.msra.mxu0 %v80
    %1381 = vmatprep.subr.mxu0 0.0
    %1382 = vmatpush1.msra.mxu0 %v81
    %1383 = vmatprep.subr.mxu0 0.0
    %1384 = vmatpush1.msra.mxu0 %v82
    %1385 = vmatprep.subr.mxu0 0.0
    %1386 = vmatpush1.msra.mxu0 %v83
    %1387 = vmatprep.subr.mxu0 0.0
    %1388 = vmatpush1.msra.mxu0 0.0
    %1389 = vmatprep.subr.mxu0 0.0
    %1390 = vmatpush1.msra.mxu0 0.0
    %1391 = vmatprep.subr.mxu0 0.0
    %1392 = vmatpush1.msra.mxu0 0.0
    %1393 = vmatprep.subr.mxu0 0.0
    %1394 = vmatpush1.msra.mxu0 0.0
    %1395 = vmatprep.subr.mxu0 0.0
    %1396 = vmatpush1.msra.mxu0 0.0
    %1397 = vmatprep.subr.mxu0 0.0
    %1398 = vmatpush1.msra.mxu0 0.0
    %1399 = vmatprep.subr.mxu0 0.0
    %1400 = vmatpush1.msra.mxu0 0.0
    %1401 = vmatprep.subr.mxu0 0.0
    %1402 = vmatpush1.msra.mxu0 0.0
    %1403 = vmatprep.subr.mxu0 0.0
    %1404 = vmatpush1.msra.mxu0 0.0
    %1405 = vmatprep.subr.mxu0 0.0
    %1406 = vmatpush1.msra.mxu0 0.0
    %1407 = vmatprep.subr.mxu0 0.0
    %1408 = vmatpush1.msra.mxu0 0.0
    %1409 = vmatprep.subr.mxu0 0.0
    %1410 = vmatpush1.msra.mxu0 0.0
    %1411 = vmatprep.subr.mxu0 0.0
    %1412 = vmatpush1.msra.mxu0 0.0
    %1413 = vmatprep.subr.mxu0 0.0
    %1414 = vmatpush1.msra.mxu0 0.0
    %1415 = vmatprep.subr.mxu0 0.0
    %1416 = vmatpush1.msra.mxu0 0.0
    %1417 = vmatprep.subr.mxu0 0.0
    %1418 = vmatpush1.msra.mxu0 0.0
    %1419 = vmatprep.subr.mxu0 0.0
    %1420 = vmatpush1.msra.mxu0 0.0
    %1421 = vmatprep.subr.mxu0 0.0
    %1422 = vmatpush1.msra.mxu0 0.0
    %1423 = vmatprep.subr.mxu0 0.0
    %1424 = vmatpush1.msra.mxu0 0.0
    %1425 = vmatprep.subr.mxu0 0.0
    %1426 = vmatpush1.msra.mxu0 0.0
    %1427 = vmatprep.subr.mxu0 0.0
    %1428 = vmatpush1.msra.mxu0 0.0
    %1429 = vmatprep.subr.mxu0 0.0
    %1430 = vmatpush1.msra.mxu0 0.0
    %1431 = vmatprep.subr.mxu0 0.0
    %1432 = vmatpush1.msra.mxu0 0.0
    %1433 = vmatprep.subr.mxu0 0.0
    %1434 = vmatpush1.msra.mxu0 0.0
    %1435 = vmatprep.subr.mxu0 0.0
    %1436 = vmatpush1.msra.mxu0 0.0
    %1437 = vmatprep.subr.mxu0 0.0
    %1438 = vmatpush1.msra.mxu0 0.0
    %1439 = vmatprep.subr.mxu0 0.0
    %1440 = vmatpush1.msra.mxu0 0.0
    %1441 = vmatprep.subr.mxu0 0.0
    %1442 = vmatpush1.msra.mxu0 0.0
    %1443 = vmatprep.mubr.f32.mxu0 0.0
    %1444 = vmatmul.mubr.f32.gmra.mrb[0].mxu0 %v1374
    %v1445 = vpop.f32.mrb[0].mxu0
    %v1446 = vadd.f32 %v72, %v1445
    %v1447 = vpop.f32.mrb[0].mxu0
    %1448 = vmatprep.mubr.f32.mxu0 0.0
    %1449 = vmatmul.mubr.f32.gmra.mrb[0].mxu0 %v1377
    %v1450 = vpop.f32.mrb[0].mxu0
    %v1451 = vadd.f32 %v73, %v1450
    %v1452 = vpop.f32.mrb[0].mxu0
    %1453 = vdwg.mxu0
    %v1454 = vmul.f32 %v1446, 0.5
    %v1455 = vmul.f32 %v1451, 0.5
    %v1456 = vmul.f32 %v1446, 0.044715
    %v1457 = vmul.f32 %v1451, 0.044715
    %v1458 = vmul.f32 %v1456, %v1446
    %v1459 = vmul.f32 %v1457, %v1451
    %v1460 = vmul.f32 %v1458, %v1446
    %v1461 = vmul.f32 %v1459, %v1451
    %v1462 = vadd.f32 %v1446, %v1460
    %v1463 = vadd.f32 %v1451, %v1461
    %v1464 = vmul.f32 %v1462, 0.7978846
    %v1465 = vmul.f32 %v1463, 0.7978846
    %v1466 = vtanh.pop %v1464
    %v1467 = vtanh.pop %v1465
    %v1468 = vadd.f32 %v1466, 1.0
    %v1469 = vadd.f32 %v1467, 1.0
    %v1470 = vmul.f32 %v1454, %v1468
    %v1471 = vmul.f32 %v1455, %v1469
    %vm1472 = vcmask 523264
    %v1474 = vsel %vm1472, %v1470, 0
    %v1477 = vsel %vm1472, %v1471, 0
    %1479 = vmatprep.subr.mxu0 0.0
    %1480 = vmatpush1.msra.mxu0 %v84
    %1481 = vmatprep.subr.mxu0 0.0
    %1482 = vmatpush1.msra.mxu0 %v85
    %1483 = vmatprep.subr.mxu0 0.0
    %1484 = vmatpush1.msra.mxu0 %v86
    %1485 = vmatprep.subr.mxu0 0.0
    %1486 = vmatpush1.msra.mxu0 %v87
    %1487 = vmatprep.subr.mxu0 0.0
    %1488 = vmatpush1.msra.mxu0 %v88
    %1489 = vmatprep.subr.mxu0 0.0
    %1490 = vmatpush1.msra.mxu0 %v89
    %1491 = vmatprep.subr.mxu0 0.0
    %1492 = vmatpush1.msra.mxu0 %v90
    %1493 = vmatprep.subr.mxu0 0.0
    %1494 = vmatpush1.msra.mxu0 %v91
    %1495 = vmatprep.subr.mxu0 0.0
    %1496 = vmatpush1.msra.mxu0 0.0
    %1497 = vmatprep.subr.mxu0 0.0
    %1498 = vmatpush1.msra.mxu0 0.0
    %1499 = vmatprep.subr.mxu0 0.0
    %1500 = vmatpush1.msra.mxu0 0.0
    %1501 = vmatprep.subr.mxu0 0.0
    %1502 = vmatpush1.msra.mxu0 0.0
    %1503 = vmatprep.subr.mxu0 0.0
    %1504 = vmatpush1.msra.mxu0 0.0
    %1505 = vmatprep.subr.mxu0 0.0
    %1506 = vmatpush1.msra.mxu0 0.0
    %1507 = vmatprep.subr.mxu0 0.0
    %1508 = vmatpush1.msra.mxu0 0.0
    %1509 = vmatprep.subr.mxu0 0.0
    %1510 = vmatpush1.msra.mxu0 0.0
    %1511 = vmatprep.subr.mxu0 0.0
    %1512 = vmatpush1.msra.mxu0 0.0
    %1513 = vmatprep.subr.mxu0 0.0
    %1514 = vmatpush1.msra.mxu0 0.0
    %1515 = vmatprep.subr.mxu0 0.0
    %1516 = vmatpush1.msra.mxu0 0.0
    %1517 = vmatprep.subr.mxu0 0.0
    %1518 = vmatpush1.msra.mxu0 0.0
    %1519 = vmatprep.subr.mxu0 0.0
    %1520 = vmatpush1.msra.mxu0 0.0
    %1521 = vmatprep.subr.mxu0 0.0
    %1522 = vmatpush1.msra.mxu0 0.0
    %1523 = vmatprep.subr.mxu0 0.0
    %1524 = vmatpush1.msra.mxu0 0.0
    %1525 = vmatprep.subr.mxu0 0.0
    %1526 = vmatpush1.msra.mxu0 0.0
    %1527 = vmatprep.subr.mxu0 0.0
    %1528 = vmatpush1.msra.mxu0 0.0
    %1529 = vmatprep.subr.mxu0 0.0
    %1530 = vmatpush1.msra.mxu0 0.0
    %1531 = vmatprep.subr.mxu0 0.0
    %1532 = vmatpush1.msra.mxu0 0.0
    %1533 = vmatprep.subr.mxu0 0.0
    %1534 = vmatpush1.msra.mxu0 0.0
    %1535 = vmatprep.subr.mxu0 0.0
    %1536 = vmatpush1.msra.mxu0 0.0
    %1537 = vmatprep.subr.mxu0 0.0
    %1538 = vmatpush1.msra.mxu0 0.0
    %1539 = vmatprep.subr.mxu0 0.0
    %1540 = vmatpush1.msra.mxu0 0.0
    %1541 = vmatprep.subr.mxu0 0.0
    %1542 = vmatpush1.msra.mxu0 0.0
    %1543 = vmatprep.mubr.f32.mxu0 0.0
    %1544 = vmatmul.mubr.f32.gmra.mrb[0].mxu0 %v1474
    %v1545 = vpop.f32.mrb[0].mxu0
    %v1546 = vadd.f32 %v74, %v1545
    %v1547 = vpop.f32.mrb[0].mxu0
    %1548 = vmatprep.mubr.f32.mxu0 0.0
    %1549 = vmatmul.mubr.f32.gmra.mrb[0].mxu0 %v1477
    %v1550 = vpop.f32.mrb[0].mxu0
    %v1551 = vadd.f32 %v75, %v1550
    %v1552 = vpop.f32.mrb[0].mxu0
    %1553 = vdwg.mxu0
    %v1554 = vadd.f32 %v1341, %v1546
    %v1555 = vadd.f32 %v1342, %v1551
    %1556 = vst.msk [vmem:[#allocation8] sm:$0xff] %vm92, %v1554
    %1557 = vst.msk [vmem:[#allocation8 + $0x8] sm:$0xff] %vm92, %v1555
    // Predicated region
    $region26: #{tpu_custom_call.1} parent=1 // pred_check
      _
    $region27: #{tpu_custom_call.1} parent=1 // pred_check_branch
      %1559 = sbr.rel (0) target = $region29
    $region28: #{tpu_custom_call.1} parent=1 // pred_region
      %s1561 = ssub.s32 256, 256
      %1562 = vsyncadd [#allocation4], %s1561
      %s1563 = sshll.u32 [#allocation8], 4
      %s1564 = int_to_ptr.vmem [resolvable:$true] %s1563
      %1569 = dma.vmem_to_hbm [thread:$0]  %s1564, 256, %s3, [#allocation4], 128, 128, 8
    $region29: #{tpu_custom_call.1} parent=1 // pred_fallthru
      _
    // Predicated region
    $region30: #{tpu_custom_call.1} parent=1 // pred_check
      _
    $region31: #{tpu_custom_call.1} parent=1 // pred_check_branch
      %1571 = sbr.rel (0) target = $region33
    $region32: #{tpu_custom_call.1} parent=1 // pred_region
      %1572 = dma.done [#allocation4], 256
    $region33: #{tpu_custom_call.1} parent=1 // pred_fallthru
      _
    %1573 = vsyncpa [#allocation3], 1
    %1574 = vsyncpa [#allocation6], 1
    %1575 = vsyncpa [#allocation4], 1

</llo_original>
